<compile_context>
chip_gen: v7x
topology: tpu7x:2x2x1
jax: 0.10.0
libtpu: 0.0.40
codegen_flags: <defaults>
</compile_context>

<pallas_src>
import jax
import jax.numpy as jnp
import numpy as np
from jax.experimental import pallas as pl
from jax.experimental.pallas import tpu as pltpu

HIDDEN = 32      # hidden_dim
INPUT_DIM = 32   # input_dim (= LSTM input feature size, no embedding)
TAGSET = 8       # tagset_size
BATCH = 2
SEQ = 8


def lstm_tagger_kernel(x_ref, wih_ref, whh_ref, b_ref, h0_ref, c0_ref,
                       wtag_ref, btag_ref,
                       tag_ref, hn_ref, cn_ref,
                       hs_sc):
    """Entire LSTM-tagger forward pass in a single program.

    x_ref    : (T*B, D)    time-major inputs, row index = t*B + b
    wih_ref  : (D, 4H)     W_ih^T   (PyTorch gate order i, f, g, o)
    whh_ref  : (H, 4H)     W_hh^T
    b_ref    : (1, 4H)     b_ih + b_hh
    h0/c0    : (B, H)      initial states
    wtag_ref : (H, tagset) hidden2tag weight^T
    btag_ref : (1, tagset) hidden2tag bias
    tag_ref  : (T*B, tagset) per-timestep tag scores, row index = t*B + b
    hn/cn    : (B, H)      final states (written once, after the loop)
    hs_sc    : (T*B, H)    VMEM scratch collecting h_t for the fused tag matmul
    """
    H, B, T = HIDDEN, BATCH, SEQ

    # Hoisted input projection: one (T*B, D) @ (D, 4H) matmul, off the serial path.
    gates_x = (jnp.dot(x_ref[...], wih_ref[...],
                       preferred_element_type=jnp.float32) + b_ref[...])
    whh = whh_ref[...]

    h = h0_ref[...]            # (B, H) carried in vregs
    c = c0_ref[...]
    # Fully unrolled time loop (T=8 is a static Python int, so this is the same
    # unrolled code lax.fori_loop(unroll=True) would produce, with static indices).
    for t in range(T):
        gates = gates_x[t * B:(t + 1) * B, :] + jnp.dot(
            h, whh, preferred_element_type=jnp.float32)        # (B, 4H)
        # Two full-vreg EUP tanh ops instead of 4 sub-vreg transcendentals:
        # sigmoid(x) == 0.5 * tanh(0.5 * x) + 0.5 (mathematically exact).
        sig = 0.5 * jnp.tanh(0.5 * gates) + 0.5
        tnh = jnp.tanh(gates)
        i = sig[:, 0:H]
        f = sig[:, H:2 * H]
        g = tnh[:, 2 * H:3 * H]
        o = sig[:, 3 * H:4 * H]
        c = f * c + i * g
        h = o * jnp.tanh(c)
        hs_sc[t * B:(t + 1) * B, :] = h    # static-offset sublane store

    # Hoisted tag projection: single matmul + single store of the whole tag slab.
    tag_ref[...] = (jnp.dot(hs_sc[...], wtag_ref[...],
                            preferred_element_type=jnp.float32) + btag_ref[...])
    hn_ref[...] = h
    cn_ref[...] = c


def lstm_tagger_forward(x, params, h0, c0):
    """x: (B, T, D) float32. Returns (tag_space (B,T,tagset), (hn, cn))."""
    B, T, D = x.shape
    H = HIDDEN
    # Time-major, flattened: row t*B + b corresponds to x[b, t, :].
    x2d = jnp.transpose(x, (1, 0, 2)).reshape(T * B, D)
    wih = params["w_ih"].T                                 # (D, 4H)
    whh = params["w_hh"].T                                 # (H, 4H)
    b = (params["b_ih"] + params["b_hh"]).reshape(1, 4 * H)
    wtag = params["w_tag"].T                               # (H, tagset)
    btag = params["b_tag"].reshape(1, TAGSET)

    grid_spec = pltpu.PrefetchScalarGridSpec(
        num_scalar_prefetch=0,
        grid=(1,),   # single program: the recurrence is unrolled inside the kernel
        in_specs=[
            pl.BlockSpec((T * B, D), lambda i: (0, 0)),      # x, whole sequence
            pl.BlockSpec((D, 4 * H), lambda i: (0, 0)),      # W_ih^T
            pl.BlockSpec((H, 4 * H), lambda i: (0, 0)),      # W_hh^T
            pl.BlockSpec((1, 4 * H), lambda i: (0, 0)),      # bias
            pl.BlockSpec((B, H), lambda i: (0, 0)),          # h0
            pl.BlockSpec((B, H), lambda i: (0, 0)),          # c0
            pl.BlockSpec((H, TAGSET), lambda i: (0, 0)),     # hidden2tag W^T
            pl.BlockSpec((1, TAGSET), lambda i: (0, 0)),     # hidden2tag b
        ],
        out_specs=[
            pl.BlockSpec((T * B, TAGSET), lambda i: (0, 0)),  # tag scores slab
            pl.BlockSpec((B, H), lambda i: (0, 0)),           # hn
            pl.BlockSpec((B, H), lambda i: (0, 0)),           # cn
        ],
        scratch_shapes=[
            pltpu.VMEM((T * B, H), jnp.float32),   # all h_t, for the fused tag matmul
        ],
    )

    tag2d, hn, cn = pl.pallas_call(
        lstm_tagger_kernel,
        out_shape=(
            jax.ShapeDtypeStruct((T * B, TAGSET), jnp.float32),
            jax.ShapeDtypeStruct((B, H), jnp.float32),
            jax.ShapeDtypeStruct((B, H), jnp.float32),
        ),
        grid_spec=grid_spec,
        compiler_params=pltpu.CompilerParams(
            dimension_semantics=("arbitrary",)),   # serial recurrence, one core
    )(x2d, wih, whh, b, h0, c0, wtag, btag)

    tag_space = jnp.transpose(tag2d.reshape(T, B, TAGSET), (1, 0, 2))  # (B,T,tagset)
    return tag_space, (hn[None, ...], cn[None, ...])


def lstm_tagger_reference(x, params, h0, c0):
    """Pure-JAX reference matching PyTorch nn.LSTM + nn.Linear semantics."""
    H = HIDDEN
    hp = jax.lax.Precision.HIGHEST
    wih, whh = params["w_ih"], params["w_hh"]
    b = params["b_ih"] + params["b_hh"]

    def step(carry, x_t):
        h, c = carry
        gates = (jnp.dot(x_t, wih.T, precision=hp)
                 + jnp.dot(h, whh.T, precision=hp) + b)
        i = jax.nn.sigmoid(gates[:, 0:H])
        f = jax.nn.sigmoid(gates[:, H:2 * H])
        g = jnp.tanh(gates[:, 2 * H:3 * H])
        o = jax.nn.sigmoid(gates[:, 3 * H:4 * H])
        c_new = f * c + i * g
        h_new = o * jnp.tanh(c_new)
        return (h_new, c_new), h_new

    xt = jnp.transpose(x, (1, 0, 2))
    (hn, cn), hs = jax.lax.scan(step, (h0, c0), xt)
    lstm_out = jnp.transpose(hs, (1, 0, 2))                               # (B, T, H)
    tag_space = jnp.dot(lstm_out, params["w_tag"].T, precision=hp) + params["b_tag"]
    return tag_space, (hn[None, ...], cn[None, ...])


def init_params(key):
    """Deterministic params mimicking PyTorch's default uniform(-k, k) init."""
    H, D = HIDDEN, INPUT_DIM
    k_lstm = 1.0 / np.sqrt(H)
    k_lin = 1.0 / np.sqrt(H)  # in_features of hidden2tag = H (unidirectional)
    ks = jax.random.split(key, 6)
    return {
        "w_ih": jax.random.uniform(ks[0], (4 * H, D), jnp.float32, -k_lstm, k_lstm),
        "w_hh": jax.random.uniform(ks[1], (4 * H, H), jnp.float32, -k_lstm, k_lstm),
        "b_ih": jax.random.uniform(ks[2], (4 * H,), jnp.float32, -k_lstm, k_lstm),
        "b_hh": jax.random.uniform(ks[3], (4 * H,), jnp.float32, -k_lstm, k_lstm),
        "w_tag": jax.random.uniform(ks[4], (TAGSET, H), jnp.float32, -k_lin, k_lin),
        "b_tag": jax.random.uniform(ks[5], (TAGSET,), jnp.float32, -k_lin, k_lin),
    }


if __name__ == "__main__":
    key = jax.random.PRNGKey(0)
    k_x, k_h, k_c, k_p = jax.random.split(key, 4)

    x = jax.random.normal(k_x, (BATCH, SEQ, INPUT_DIM), jnp.float32)
    # init_hidden in the PyTorch module uses torch.rand -> uniform [0, 1)
    h0 = jax.random.uniform(k_h, (BATCH, HIDDEN), jnp.float32)
    c0 = jax.random.uniform(k_c, (BATCH, HIDDEN), jnp.float32)
    params = init_params(k_p)

    tag_space, (hn, cn) = lstm_tagger_forward(x, params, h0, c0)
    jax.block_until_ready((tag_space, hn, cn))

    ref_tag, (ref_hn, ref_cn) = lstm_tagger_reference(x, params, h0, c0)
    assert tag_space.shape == (BATCH, SEQ, TAGSET)
    assert hn.shape == (1, BATCH, HIDDEN) and cn.shape == (1, BATCH, HIDDEN)
    # Tolerance absorbs MXU-vs-XLA f32 matmul rounding / accumulation-order
    # differences at hardware-default precision across TPU generations; the
    # restructured gate math itself is exact w.r.t. the original formulation.
    np.testing.assert_allclose(np.asarray(tag_space), np.asarray(ref_tag),
                               rtol=1e-2, atol=1e-2)
    np.testing.assert_allclose(np.asarray(hn), np.asarray(ref_hn),
                               rtol=1e-2, atol=1e-2)
    np.testing.assert_allclose(np.asarray(cn), np.asarray(ref_cn),
                               rtol=1e-2, atol=1e-2)

    print("KERNEL_OK")
</pallas_src>

<mosaic_0001>
module attributes {stable_mosaic.version = 11 : i64} {
  func.func @lstm_tagger_kernel(%arg0: i32, %arg1: memref<16x32xf32, #tpu.memory_space<vmem>>, %arg2: memref<32x128xf32, #tpu.memory_space<vmem>>, %arg3: memref<32x128xf32, #tpu.memory_space<vmem>>, %arg4: memref<1x128xf32, #tpu.memory_space<vmem>>, %arg5: memref<2x32xf32, #tpu.memory_space<vmem>>, %arg6: memref<2x32xf32, #tpu.memory_space<vmem>>, %arg7: memref<32x8xf32, #tpu.memory_space<vmem>>, %arg8: memref<1x8xf32, #tpu.memory_space<vmem>>, %arg9: memref<16x8xf32, #tpu.memory_space<vmem>>, %arg10: memref<2x32xf32, #tpu.memory_space<vmem>>, %arg11: memref<2x32xf32, #tpu.memory_space<vmem>>, %arg12: memref<16x32xf32, #tpu.memory_space<vmem>>) attributes {dimension_semantics = [#tpu.dimension_semantics<arbitrary>], iteration_bounds = array<i64: 1>, scalar_prefetch = 0 : i64, scratch_operands = 1 : i64, tpu.core_type = #tpu.core_type<tc>, window_params = [{pipeline_mode = #tpu.pipeline_mode<synchronous>, transform_indices = @transform_0, window_bounds = array<i64: 16, 32>}, {pipeline_mode = #tpu.pipeline_mode<synchronous>, transform_indices = @transform_1, window_bounds = array<i64: 32, 128>}, {pipeline_mode = #tpu.pipeline_mode<synchronous>, transform_indices = @transform_2, window_bounds = array<i64: 32, 128>}, {pipeline_mode = #tpu.pipeline_mode<synchronous>, transform_indices = @transform_3, window_bounds = array<i64: 1, 128>}, {pipeline_mode = #tpu.pipeline_mode<synchronous>, transform_indices = @transform_4, window_bounds = array<i64: 2, 32>}, {pipeline_mode = #tpu.pipeline_mode<synchronous>, transform_indices = @transform_5, window_bounds = array<i64: 2, 32>}, {pipeline_mode = #tpu.pipeline_mode<synchronous>, transform_indices = @transform_6, window_bounds = array<i64: 32, 8>}, {pipeline_mode = #tpu.pipeline_mode<synchronous>, transform_indices = @transform_7, window_bounds = array<i64: 1, 8>}, {pipeline_mode = #tpu.pipeline_mode<synchronous>, transform_indices = @transform_8, window_bounds = array<i64: 16, 8>}, {pipeline_mode = #tpu.pipeline_mode<synchronous>, transform_indices = @transform_9, window_bounds = array<i64: 2, 32>}, {pipeline_mode = #tpu.pipeline_mode<synchronous>, transform_indices = @transform_10, window_bounds = array<i64: 2, 32>}]} {
    %c0 = arith.constant 0 : index
    %c0_0 = arith.constant 0 : index
    %0 = vector.load %arg1[%c0, %c0_0] : memref<16x32xf32, #tpu.memory_space<vmem>>, vector<16x32xf32>
    %c0_1 = arith.constant 0 : index
    %c0_2 = arith.constant 0 : index
    %1 = vector.load %arg2[%c0_1, %c0_2] : memref<32x128xf32, #tpu.memory_space<vmem>>, vector<32x128xf32>
    %cst = arith.constant dense<0.000000e+00> : vector<16x128xf32>
    %2 = tpu.matmul %0, %1, %cst {dimension_numbers = #tpu.dot_dimension_numbers<[1], [0], [0], [1], [0, 0, 1, 1], [], []>} : vector<16x32xf32>, vector<32x128xf32>, vector<16x128xf32> -> vector<16x128xf32>
    %c0_3 = arith.constant 0 : index
    %c0_4 = arith.constant 0 : index
    %3 = vector.load %arg4[%c0_3, %c0_4] : memref<1x128xf32, #tpu.memory_space<vmem>>, vector<1x128xf32>
    %4 = vector.broadcast %3 : vector<1x128xf32> to vector<16x128xf32>
    %5 = arith.addf %2, %4 : vector<16x128xf32>
    %c0_5 = arith.constant 0 : index
    %c0_6 = arith.constant 0 : index
    %6 = vector.load %arg3[%c0_5, %c0_6] : memref<32x128xf32, #tpu.memory_space<vmem>>, vector<32x128xf32>
    %c0_7 = arith.constant 0 : index
    %c0_8 = arith.constant 0 : index
    %7 = vector.load %arg5[%c0_7, %c0_8] : memref<2x32xf32, #tpu.memory_space<vmem>>, vector<2x32xf32>
    %c0_9 = arith.constant 0 : index
    %c0_10 = arith.constant 0 : index
    %8 = vector.load %arg6[%c0_9, %c0_10] : memref<2x32xf32, #tpu.memory_space<vmem>>, vector<2x32xf32>
    %9 = vector.extract_strided_slice %5 {offsets = [0, 0], sizes = [2, 128], strides = [1, 1]} : vector<16x128xf32> to vector<2x128xf32>
    %cst_11 = arith.constant dense<0.000000e+00> : vector<2x128xf32>
    %10 = tpu.matmul %7, %6, %cst_11 {dimension_numbers = #tpu.dot_dimension_numbers<[1], [0], [0], [1], [0, 0, 1, 1], [], []>} : vector<2x32xf32>, vector<32x128xf32>, vector<2x128xf32> -> vector<2x128xf32>
    %11 = arith.addf %9, %10 : vector<2x128xf32>
    %cst_12 = arith.constant 5.000000e-01 : f32
    %12 = vector.broadcast %cst_12 : f32 to vector<2x128xf32>
    %13 = arith.mulf %12, %11 : vector<2x128xf32>
    %14 = math.tanh %13 : vector<2x128xf32>
    %cst_13 = arith.constant 5.000000e-01 : f32
    %15 = vector.broadcast %cst_13 : f32 to vector<2x128xf32>
    %16 = arith.mulf %15, %14 : vector<2x128xf32>
    %cst_14 = arith.constant 5.000000e-01 : f32
    %17 = vector.broadcast %cst_14 : f32 to vector<2x128xf32>
    %18 = arith.addf %16, %17 : vector<2x128xf32>
    %19 = math.tanh %11 : vector<2x128xf32>
    %20 = vector.extract_strided_slice %18 {offsets = [0, 0], sizes = [2, 32], strides = [1, 1]} : vector<2x128xf32> to vector<2x32xf32>
    %21 = vector.extract_strided_slice %18 {offsets = [0, 32], sizes = [2, 32], strides = [1, 1]} : vector<2x128xf32> to vector<2x32xf32>
    %22 = vector.extract_strided_slice %19 {offsets = [0, 64], sizes = [2, 32], strides = [1, 1]} : vector<2x128xf32> to vector<2x32xf32>
    %23 = vector.extract_strided_slice %18 {offsets = [0, 96], sizes = [2, 32], strides = [1, 1]} : vector<2x128xf32> to vector<2x32xf32>
    %24 = arith.mulf %21, %8 : vector<2x32xf32>
    %25 = arith.mulf %20, %22 : vector<2x32xf32>
    %26 = arith.addf %24, %25 : vector<2x32xf32>
    %27 = math.tanh %26 : vector<2x32xf32>
    %28 = arith.mulf %23, %27 : vector<2x32xf32>
    %c0_15 = arith.constant 0 : index
    %c0_16 = arith.constant 0 : index
    %29 = vector.load %arg12[%c0_15, %c0_16] : memref<16x32xf32, #tpu.memory_space<vmem>>, vector<2x32xf32>
    tpu.vector_store %arg12[%c0_15, %c0_16], %28 {strides = array<i32>} : memref<16x32xf32, #tpu.memory_space<vmem>>, vector<2x32xf32>,
    %30 = vector.extract_strided_slice %5 {offsets = [2, 0], sizes = [2, 128], strides = [1, 1]} : vector<16x128xf32> to vector<2x128xf32>
    %cst_17 = arith.constant dense<0.000000e+00> : vector<2x128xf32>
    %31 = tpu.matmul %28, %6, %cst_17 {dimension_numbers = #tpu.dot_dimension_numbers<[1], [0], [0], [1], [0, 0, 1, 1], [], []>} : vector<2x32xf32>, vector<32x128xf32>, vector<2x128xf32> -> vector<2x128xf32>
    %32 = arith.addf %30, %31 : vector<2x128xf32>
    %cst_18 = arith.constant 5.000000e-01 : f32
    %33 = vector.broadcast %cst_18 : f32 to vector<2x128xf32>
    %34 = arith.mulf %33, %32 : vector<2x128xf32>
    %35 = math.tanh %34 : vector<2x128xf32>
    %cst_19 = arith.constant 5.000000e-01 : f32
    %36 = vector.broadcast %cst_19 : f32 to vector<2x128xf32>
    %37 = arith.mulf %36, %35 : vector<2x128xf32>
    %cst_20 = arith.constant 5.000000e-01 : f32
    %38 = vector.broadcast %cst_20 : f32 to vector<2x128xf32>
    %39 = arith.addf %37, %38 : vector<2x128xf32>
    %40 = math.tanh %32 : vector<2x128xf32>
    %41 = vector.extract_strided_slice %39 {offsets = [0, 0], sizes = [2, 32], strides = [1, 1]} : vector<2x128xf32> to vector<2x32xf32>
    %42 = vector.extract_strided_slice %39 {offsets = [0, 32], sizes = [2, 32], strides = [1, 1]} : vector<2x128xf32> to vector<2x32xf32>
    %43 = vector.extract_strided_slice %40 {offsets = [0, 64], sizes = [2, 32], strides = [1, 1]} : vector<2x128xf32> to vector<2x32xf32>
    %44 = vector.extract_strided_slice %39 {offsets = [0, 96], sizes = [2, 32], strides = [1, 1]} : vector<2x128xf32> to vector<2x32xf32>
    %45 = arith.mulf %42, %26 : vector<2x32xf32>
    %46 = arith.mulf %41, %43 : vector<2x32xf32>
    %47 = arith.addf %45, %46 : vector<2x32xf32>
    %48 = math.tanh %47 : vector<2x32xf32>
    %49 = arith.mulf %44, %48 : vector<2x32xf32>
    %c2 = arith.constant 2 : index
    %c0_21 = arith.constant 0 : index
    %50 = vector.load %arg12[%c2, %c0_21] : memref<16x32xf32, #tpu.memory_space<vmem>>, vector<2x32xf32>
    tpu.vector_store %arg12[%c2, %c0_21], %49 {strides = array<i32>} : memref<16x32xf32, #tpu.memory_space<vmem>>, vector<2x32xf32>,
    %51 = vector.extract_strided_slice %5 {offsets = [4, 0], sizes = [2, 128], strides = [1, 1]} : vector<16x128xf32> to vector<2x128xf32>
    %cst_22 = arith.constant dense<0.000000e+00> : vector<2x128xf32>
    %52 = tpu.matmul %49, %6, %cst_22 {dimension_numbers = #tpu.dot_dimension_numbers<[1], [0], [0], [1], [0, 0, 1, 1], [], []>} : vector<2x32xf32>, vector<32x128xf32>, vector<2x128xf32> -> vector<2x128xf32>
    %53 = arith.addf %51, %52 : vector<2x128xf32>
    %cst_23 = arith.constant 5.000000e-01 : f32
    %54 = vector.broadcast %cst_23 : f32 to vector<2x128xf32>
    %55 = arith.mulf %54, %53 : vector<2x128xf32>
    %56 = math.tanh %55 : vector<2x128xf32>
    %cst_24 = arith.constant 5.000000e-01 : f32
    %57 = vector.broadcast %cst_24 : f32 to vector<2x128xf32>
    %58 = arith.mulf %57, %56 : vector<2x128xf32>
    %cst_25 = arith.constant 5.000000e-01 : f32
    %59 = vector.broadcast %cst_25 : f32 to vector<2x128xf32>
    %60 = arith.addf %58, %59 : vector<2x128xf32>
    %61 = math.tanh %53 : vector<2x128xf32>
    %62 = vector.extract_strided_slice %60 {offsets = [0, 0], sizes = [2, 32], strides = [1, 1]} : vector<2x128xf32> to vector<2x32xf32>
    %63 = vector.extract_strided_slice %60 {offsets = [0, 32], sizes = [2, 32], strides = [1, 1]} : vector<2x128xf32> to vector<2x32xf32>
    %64 = vector.extract_strided_slice %61 {offsets = [0, 64], sizes = [2, 32], strides = [1, 1]} : vector<2x128xf32> to vector<2x32xf32>
    %65 = vector.extract_strided_slice %60 {offsets = [0, 96], sizes = [2, 32], strides = [1, 1]} : vector<2x128xf32> to vector<2x32xf32>
    %66 = arith.mulf %63, %47 : vector<2x32xf32>
    %67 = arith.mulf %62, %64 : vector<2x32xf32>
    %68 = arith.addf %66, %67 : vector<2x32xf32>
    %69 = math.tanh %68 : vector<2x32xf32>
    %70 = arith.mulf %65, %69 : vector<2x32xf32>
    %c4 = arith.constant 4 : index
    %c0_26 = arith.constant 0 : index
    %71 = vector.load %arg12[%c4, %c0_26] : memref<16x32xf32, #tpu.memory_space<vmem>>, vector<2x32xf32>
    tpu.vector_store %arg12[%c4, %c0_26], %70 {strides = array<i32>} : memref<16x32xf32, #tpu.memory_space<vmem>>, vector<2x32xf32>,
    %72 = vector.extract_strided_slice %5 {offsets = [6, 0], sizes = [2, 128], strides = [1, 1]} : vector<16x128xf32> to vector<2x128xf32>
    %cst_27 = arith.constant dense<0.000000e+00> : vector<2x128xf32>
    %73 = tpu.matmul %70, %6, %cst_27 {dimension_numbers = #tpu.dot_dimension_numbers<[1], [0], [0], [1], [0, 0, 1, 1], [], []>} : vector<2x32xf32>, vector<32x128xf32>, vector<2x128xf32> -> vector<2x128xf32>
    %74 = arith.addf %72, %73 : vector<2x128xf32>
    %cst_28 = arith.constant 5.000000e-01 : f32
    %75 = vector.broadcast %cst_28 : f32 to vector<2x128xf32>
    %76 = arith.mulf %75, %74 : vector<2x128xf32>
    %77 = math.tanh %76 : vector<2x128xf32>
    %cst_29 = arith.constant 5.000000e-01 : f32
    %78 = vector.broadcast %cst_29 : f32 to vector<2x128xf32>
    %79 = arith.mulf %78, %77 : vector<2x128xf32>
    %cst_30 = arith.constant 5.000000e-01 : f32
    %80 = vector.broadcast %cst_30 : f32 to vector<2x128xf32>
    %81 = arith.addf %79, %80 : vector<2x128xf32>
    %82 = math.tanh %74 : vector<2x128xf32>
    %83 = vector.extract_strided_slice %81 {offsets = [0, 0], sizes = [2, 32], strides = [1, 1]} : vector<2x128xf32> to vector<2x32xf32>
    %84 = vector.extract_strided_slice %81 {offsets = [0, 32], sizes = [2, 32], strides = [1, 1]} : vector<2x128xf32> to vector<2x32xf32>
    %85 = vector.extract_strided_slice %82 {offsets = [0, 64], sizes = [2, 32], strides = [1, 1]} : vector<2x128xf32> to vector<2x32xf32>
    %86 = vector.extract_strided_slice %81 {offsets = [0, 96], sizes = [2, 32], strides = [1, 1]} : vector<2x128xf32> to vector<2x32xf32>
    %87 = arith.mulf %84, %68 : vector<2x32xf32>
    %88 = arith.mulf %83, %85 : vector<2x32xf32>
    %89 = arith.addf %87, %88 : vector<2x32xf32>
    %90 = math.tanh %89 : vector<2x32xf32>
    %91 = arith.mulf %86, %90 : vector<2x32xf32>
    %c6 = arith.constant 6 : index
    %c0_31 = arith.constant 0 : index
    %92 = vector.load %arg12[%c6, %c0_31] : memref<16x32xf32, #tpu.memory_space<vmem>>, vector<2x32xf32>
    tpu.vector_store %arg12[%c6, %c0_31], %91 {strides = array<i32>} : memref<16x32xf32, #tpu.memory_space<vmem>>, vector<2x32xf32>,
    %93 = vector.extract_strided_slice %5 {offsets = [8, 0], sizes = [2, 128], strides = [1, 1]} : vector<16x128xf32> to vector<2x128xf32>
    %cst_32 = arith.constant dense<0.000000e+00> : vector<2x128xf32>
    %94 = tpu.matmul %91, %6, %cst_32 {dimension_numbers = #tpu.dot_dimension_numbers<[1], [0], [0], [1], [0, 0, 1, 1], [], []>} : vector<2x32xf32>, vector<32x128xf32>, vector<2x128xf32> -> vector<2x128xf32>
    %95 = arith.addf %93, %94 : vector<2x128xf32>
    %cst_33 = arith.constant 5.000000e-01 : f32
    %96 = vector.broadcast %cst_33 : f32 to vector<2x128xf32>
    %97 = arith.mulf %96, %95 : vector<2x128xf32>
    %98 = math.tanh %97 : vector<2x128xf32>
    %cst_34 = arith.constant 5.000000e-01 : f32
    %99 = vector.broadcast %cst_34 : f32 to vector<2x128xf32>
    %100 = arith.mulf %99, %98 : vector<2x128xf32>
    %cst_35 = arith.constant 5.000000e-01 : f32
    %101 = vector.broadcast %cst_35 : f32 to vector<2x128xf32>
    %102 = arith.addf %100, %101 : vector<2x128xf32>
    %103 = math.tanh %95 : vector<2x128xf32>
    %104 = vector.extract_strided_slice %102 {offsets = [0, 0], sizes = [2, 32], strides = [1, 1]} : vector<2x128xf32> to vector<2x32xf32>
    %105 = vector.extract_strided_slice %102 {offsets = [0, 32], sizes = [2, 32], strides = [1, 1]} : vector<2x128xf32> to vector<2x32xf32>
    %106 = vector.extract_strided_slice %103 {offsets = [0, 64], sizes = [2, 32], strides = [1, 1]} : vector<2x128xf32> to vector<2x32xf32>
    %107 = vector.extract_strided_slice %102 {offsets = [0, 96], sizes = [2, 32], strides = [1, 1]} : vector<2x128xf32> to vector<2x32xf32>
    %108 = arith.mulf %105, %89 : vector<2x32xf32>
    %109 = arith.mulf %104, %106 : vector<2x32xf32>
    %110 = arith.addf %108, %109 : vector<2x32xf32>
    %111 = math.tanh %110 : vector<2x32xf32>
    %112 = arith.mulf %107, %111 : vector<2x32xf32>
    %c8 = arith.constant 8 : index
    %c0_36 = arith.constant 0 : index
    %113 = vector.load %arg12[%c8, %c0_36] : memref<16x32xf32, #tpu.memory_space<vmem>>, vector<2x32xf32>
    tpu.vector_store %arg12[%c8, %c0_36], %112 {strides = array<i32>} : memref<16x32xf32, #tpu.memory_space<vmem>>, vector<2x32xf32>,
    %114 = vector.extract_strided_slice %5 {offsets = [10, 0], sizes = [2, 128], strides = [1, 1]} : vector<16x128xf32> to vector<2x128xf32>
    %cst_37 = arith.constant dense<0.000000e+00> : vector<2x128xf32>
    %115 = tpu.matmul %112, %6, %cst_37 {dimension_numbers = #tpu.dot_dimension_numbers<[1], [0], [0], [1], [0, 0, 1, 1], [], []>} : vector<2x32xf32>, vector<32x128xf32>, vector<2x128xf32> -> vector<2x128xf32>
    %116 = arith.addf %114, %115 : vector<2x128xf32>
    %cst_38 = arith.constant 5.000000e-01 : f32
    %117 = vector.broadcast %cst_38 : f32 to vector<2x128xf32>
    %118 = arith.mulf %117, %116 : vector<2x128xf32>
    %119 = math.tanh %118 : vector<2x128xf32>
    %cst_39 = arith.constant 5.000000e-01 : f32
    %120 = vector.broadcast %cst_39 : f32 to vector<2x128xf32>
    %121 = arith.mulf %120, %119 : vector<2x128xf32>
    %cst_40 = arith.constant 5.000000e-01 : f32
    %122 = vector.broadcast %cst_40 : f32 to vector<2x128xf32>
    %123 = arith.addf %121, %122 : vector<2x128xf32>
    %124 = math.tanh %116 : vector<2x128xf32>
    %125 = vector.extract_strided_slice %123 {offsets = [0, 0], sizes = [2, 32], strides = [1, 1]} : vector<2x128xf32> to vector<2x32xf32>
    %126 = vector.extract_strided_slice %123 {offsets = [0, 32], sizes = [2, 32], strides = [1, 1]} : vector<2x128xf32> to vector<2x32xf32>
    %127 = vector.extract_strided_slice %124 {offsets = [0, 64], sizes = [2, 32], strides = [1, 1]} : vector<2x128xf32> to vector<2x32xf32>
    %128 = vector.extract_strided_slice %123 {offsets = [0, 96], sizes = [2, 32], strides = [1, 1]} : vector<2x128xf32> to vector<2x32xf32>
    %129 = arith.mulf %126, %110 : vector<2x32xf32>
    %130 = arith.mulf %125, %127 : vector<2x32xf32>
    %131 = arith.addf %129, %130 : vector<2x32xf32>
    %132 = math.tanh %131 : vector<2x32xf32>
    %133 = arith.mulf %128, %132 : vector<2x32xf32>
    %c10 = arith.constant 10 : index
    %c0_41 = arith.constant 0 : index
    %134 = vector.load %arg12[%c10, %c0_41] : memref<16x32xf32, #tpu.memory_space<vmem>>, vector<2x32xf32>
    tpu.vector_store %arg12[%c10, %c0_41], %133 {strides = array<i32>} : memref<16x32xf32, #tpu.memory_space<vmem>>, vector<2x32xf32>,
    %135 = vector.extract_strided_slice %5 {offsets = [12, 0], sizes = [2, 128], strides = [1, 1]} : vector<16x128xf32> to vector<2x128xf32>
    %cst_42 = arith.constant dense<0.000000e+00> : vector<2x128xf32>
    %136 = tpu.matmul %133, %6, %cst_42 {dimension_numbers = #tpu.dot_dimension_numbers<[1], [0], [0], [1], [0, 0, 1, 1], [], []>} : vector<2x32xf32>, vector<32x128xf32>, vector<2x128xf32> -> vector<2x128xf32>
    %137 = arith.addf %135, %136 : vector<2x128xf32>
    %cst_43 = arith.constant 5.000000e-01 : f32
    %138 = vector.broadcast %cst_43 : f32 to vector<2x128xf32>
    %139 = arith.mulf %138, %137 : vector<2x128xf32>
    %140 = math.tanh %139 : vector<2x128xf32>
    %cst_44 = arith.constant 5.000000e-01 : f32
    %141 = vector.broadcast %cst_44 : f32 to vector<2x128xf32>
    %142 = arith.mulf %141, %140 : vector<2x128xf32>
    %cst_45 = arith.constant 5.000000e-01 : f32
    %143 = vector.broadcast %cst_45 : f32 to vector<2x128xf32>
    %144 = arith.addf %142, %143 : vector<2x128xf32>
    %145 = math.tanh %137 : vector<2x128xf32>
    %146 = vector.extract_strided_slice %144 {offsets = [0, 0], sizes = [2, 32], strides = [1, 1]} : vector<2x128xf32> to vector<2x32xf32>
    %147 = vector.extract_strided_slice %144 {offsets = [0, 32], sizes = [2, 32], strides = [1, 1]} : vector<2x128xf32> to vector<2x32xf32>
    %148 = vector.extract_strided_slice %145 {offsets = [0, 64], sizes = [2, 32], strides = [1, 1]} : vector<2x128xf32> to vector<2x32xf32>
    %149 = vector.extract_strided_slice %144 {offsets = [0, 96], sizes = [2, 32], strides = [1, 1]} : vector<2x128xf32> to vector<2x32xf32>
    %150 = arith.mulf %147, %131 : vector<2x32xf32>
    %151 = arith.mulf %146, %148 : vector<2x32xf32>
    %152 = arith.addf %150, %151 : vector<2x32xf32>
    %153 = math.tanh %152 : vector<2x32xf32>
    %154 = arith.mulf %149, %153 : vector<2x32xf32>
    %c12 = arith.constant 12 : index
    %c0_46 = arith.constant 0 : index
    %155 = vector.load %arg12[%c12, %c0_46] : memref<16x32xf32, #tpu.memory_space<vmem>>, vector<2x32xf32>
    tpu.vector_store %arg12[%c12, %c0_46], %154 {strides = array<i32>} : memref<16x32xf32, #tpu.memory_space<vmem>>, vector<2x32xf32>,
    %156 = vector.extract_strided_slice %5 {offsets = [14, 0], sizes = [2, 128], strides = [1, 1]} : vector<16x128xf32> to vector<2x128xf32>
    %cst_47 = arith.constant dense<0.000000e+00> : vector<2x128xf32>
    %157 = tpu.matmul %154, %6, %cst_47 {dimension_numbers = #tpu.dot_dimension_numbers<[1], [0], [0], [1], [0, 0, 1, 1], [], []>} : vector<2x32xf32>, vector<32x128xf32>, vector<2x128xf32> -> vector<2x128xf32>
    %158 = arith.addf %156, %157 : vector<2x128xf32>
    %cst_48 = arith.constant 5.000000e-01 : f32
    %159 = vector.broadcast %cst_48 : f32 to vector<2x128xf32>
    %160 = arith.mulf %159, %158 : vector<2x128xf32>
    %161 = math.tanh %160 : vector<2x128xf32>
    %cst_49 = arith.constant 5.000000e-01 : f32
    %162 = vector.broadcast %cst_49 : f32 to vector<2x128xf32>
    %163 = arith.mulf %162, %161 : vector<2x128xf32>
    %cst_50 = arith.constant 5.000000e-01 : f32
    %164 = vector.broadcast %cst_50 : f32 to vector<2x128xf32>
    %165 = arith.addf %163, %164 : vector<2x128xf32>
    %166 = math.tanh %158 : vector<2x128xf32>
    %167 = vector.extract_strided_slice %165 {offsets = [0, 0], sizes = [2, 32], strides = [1, 1]} : vector<2x128xf32> to vector<2x32xf32>
    %168 = vector.extract_strided_slice %165 {offsets = [0, 32], sizes = [2, 32], strides = [1, 1]} : vector<2x128xf32> to vector<2x32xf32>
    %169 = vector.extract_strided_slice %166 {offsets = [0, 64], sizes = [2, 32], strides = [1, 1]} : vector<2x128xf32> to vector<2x32xf32>
    %170 = vector.extract_strided_slice %165 {offsets = [0, 96], sizes = [2, 32], strides = [1, 1]} : vector<2x128xf32> to vector<2x32xf32>
    %171 = arith.mulf %168, %152 : vector<2x32xf32>
    %172 = arith.mulf %167, %169 : vector<2x32xf32>
    %173 = arith.addf %171, %172 : vector<2x32xf32>
    %174 = math.tanh %173 : vector<2x32xf32>
    %175 = arith.mulf %170, %174 : vector<2x32xf32>
    %c14 = arith.constant 14 : index
    %c0_51 = arith.constant 0 : index
    %176 = vector.load %arg12[%c14, %c0_51] : memref<16x32xf32, #tpu.memory_space<vmem>>, vector<2x32xf32>
    tpu.vector_store %arg12[%c14, %c0_51], %175 {strides = array<i32>} : memref<16x32xf32, #tpu.memory_space<vmem>>, vector<2x32xf32>,
    %c0_52 = arith.constant 0 : index
    %c0_53 = arith.constant 0 : index
    %177 = vector.load %arg12[%c0_52, %c0_53] : memref<16x32xf32, #tpu.memory_space<vmem>>, vector<16x32xf32>
    %c0_54 = arith.constant 0 : index
    %c0_55 = arith.constant 0 : index
    %178 = vector.load %arg7[%c0_54, %c0_55] : memref<32x8xf32, #tpu.memory_space<vmem>>, vector<32x8xf32>
    %cst_56 = arith.constant dense<0.000000e+00> : vector<16x8xf32>
    %179 = tpu.matmul %177, %178, %cst_56 {dimension_numbers = #tpu.dot_dimension_numbers<[1], [0], [0], [1], [0, 0, 1, 1], [], []>} : vector<16x32xf32>, vector<32x8xf32>, vector<16x8xf32> -> vector<16x8xf32>
    %c0_57 = arith.constant 0 : index
    %c0_58 = arith.constant 0 : index
    %180 = vector.load %arg8[%c0_57, %c0_58] : memref<1x8xf32, #tpu.memory_space<vmem>>, vector<1x8xf32>
    %181 = vector.broadcast %180 : vector<1x8xf32> to vector<16x8xf32>
    %182 = arith.addf %179, %181 : vector<16x8xf32>
    %c0_59 = arith.constant 0 : index
    %c0_60 = arith.constant 0 : index
    %183 = vector.load %arg9[%c0_59, %c0_60] : memref<16x8xf32, #tpu.memory_space<vmem>>, vector<16x8xf32>
    tpu.vector_store %arg9[%c0_59, %c0_60], %182 {strides = array<i32>} : memref<16x8xf32, #tpu.memory_space<vmem>>, vector<16x8xf32>,
    %c0_61 = arith.constant 0 : index
    %c0_62 = arith.constant 0 : index
    %184 = vector.load %arg10[%c0_61, %c0_62] : memref<2x32xf32, #tpu.memory_space<vmem>>, vector<2x32xf32>
    tpu.vector_store %arg10[%c0_61, %c0_62], %175 {strides = array<i32>} : memref<2x32xf32, #tpu.memory_space<vmem>>, vector<2x32xf32>,
    %c0_63 = arith.constant 0 : index
    %c0_64 = arith.constant 0 : index
    %185 = vector.load %arg11[%c0_63, %c0_64] : memref<2x32xf32, #tpu.memory_space<vmem>>, vector<2x32xf32>
    tpu.vector_store %arg11[%c0_63, %c0_64], %173 {strides = array<i32>} : memref<2x32xf32, #tpu.memory_space<vmem>>, vector<2x32xf32>,
    return
  }
  func.func @transform_0(%arg0: i32) -> (i32, i32) {
    %c0_i32 = arith.constant 0 : i32
    %c0_i32_0 = arith.constant 0 : i32
    %c0_i32_1 = arith.constant 0 : i32
    return %c0_i32, %c0_i32_0 : i32, i32
  }
  func.func @transform_1(%arg0: i32) -> (i32, i32) {
    %c0_i32 = arith.constant 0 : i32
    %c0_i32_0 = arith.constant 0 : i32
    %c0_i32_1 = arith.constant 0 : i32
    return %c0_i32, %c0_i32_0 : i32, i32
  }
  func.func @transform_2(%arg0: i32) -> (i32, i32) {
    %c0_i32 = arith.constant 0 : i32
    %c0_i32_0 = arith.constant 0 : i32
    %c0_i32_1 = arith.constant 0 : i32
    return %c0_i32, %c0_i32_0 : i32, i32
  }
  func.func @transform_3(%arg0: i32) -> (i32, i32) {
    %c0_i32 = arith.constant 0 : i32
    %c0_i32_0 = arith.constant 0 : i32
    %c0_i32_1 = arith.constant 0 : i32
    return %c0_i32, %c0_i32_0 : i32, i32
  }
  func.func @transform_4(%arg0: i32) -> (i32, i32) {
    %c0_i32 = arith.constant 0 : i32
    %c0_i32_0 = arith.constant 0 : i32
    %c0_i32_1 = arith.constant 0 : i32
    return %c0_i32, %c0_i32_0 : i32, i32
  }
  func.func @transform_5(%arg0: i32) -> (i32, i32) {
    %c0_i32 = arith.constant 0 : i32
    %c0_i32_0 = arith.constant 0 : i32
    %c0_i32_1 = arith.constant 0 : i32
    return %c0_i32, %c0_i32_0 : i32, i32
  }
  func.func @transform_6(%arg0: i32) -> (i32, i32) {
    %c0_i32 = arith.constant 0 : i32
    %c0_i32_0 = arith.constant 0 : i32
    %c0_i32_1 = arith.constant 0 : i32
    return %c0_i32, %c0_i32_0 : i32, i32
  }
  func.func @transform_7(%arg0: i32) -> (i32, i32) {
    %c0_i32 = arith.constant 0 : i32
    %c0_i32_0 = arith.constant 0 : i32
    %c0_i32_1 = arith.constant 0 : i32
    return %c0_i32, %c0_i32_0 : i32, i32
  }
  func.func @transform_8(%arg0: i32) -> (i32, i32) {
    %c0_i32 = arith.constant 0 : i32
    %c0_i32_0 = arith.constant 0 : i32
    %c0_i32_1 = arith.constant 0 : i32
    return %c0_i32, %c0_i32_0 : i32, i32
  }
  func.func @transform_9(%arg0: i32) -> (i32, i32) {
    %c0_i32 = arith.constant 0 : i32
    %c0_i32_0 = arith.constant 0 : i32
    %c0_i32_1 = arith.constant 0 : i32
    return %c0_i32, %c0_i32_0 : i32, i32
  }
  func.func @transform_10(%arg0: i32) -> (i32, i32) {
    %c0_i32 = arith.constant 0 : i32
    %c0_i32_0 = arith.constant 0 : i32
    %c0_i32_1 = arith.constant 0 : i32
    return %c0_i32, %c0_i32_0 : i32, i32
  }
}

</mosaic_0001>

<llo_original>
// kernel: tpu_custom_call.1
$region0: #{tpu_custom_call.1}
  #allocation0 [shape = 'u32[]', space=smem, size = 0x4, offset = 0x4, fixed_abs, tag = 'smem constant byte address 0x4 - core index']
  #allocation1 [shape = 'u32[144,128]{1,0:T(1,128)}', space=vmem, size = 0x12000, scoped, tag = 'internal scratch']
  #allocation2 [shape = 'f32[16,32]{1,0:T(8,128)}', space=vmem, size = 0x2000, scoped, tag = 'scratch operand']
  %s0 = inlined_call_operand.hbm [shape: f32[16,32], index: 0, kind: input, shape index: {}]
  %s1 = inlined_call_operand.vmem [shape: f32[32,128], index: 1, kind: input, shape index: {}]
  %s2 = inlined_call_operand.hbm [shape: f32[32,128], index: 2, kind: input, shape index: {}]
  %s3 = inlined_call_operand.vmem [shape: f32[1,128], index: 3, kind: input, shape index: {}]
  %s4 = inlined_call_operand.vmem [shape: f32[2,32], index: 4, kind: input, shape index: {}]
  %s5 = inlined_call_operand.vmem [shape: f32[2,32], index: 5, kind: input, shape index: {}]
  %s6 = inlined_call_operand.vmem [shape: f32[32,8], index: 6, kind: input, shape index: {}]
  %s7 = inlined_call_operand.vmem [shape: f32[1,8], index: 7, kind: input, shape index: {}]
  %s8 = inlined_call_operand.vmem [shape: f32[16,8], index: 8, kind: output, shape index: {0}]
  %s9 = inlined_call_operand.hbm [shape: f32[2,32], index: 9, kind: output, shape index: {1}]
  %s10 = inlined_call_operand.hbm [shape: f32[2,32], index: 10, kind: output, shape index: {2}]
  %11 = xla_tuple %s8, %s9, %s10
  %s12 = sld [smem:[#allocation0]]
  $region66: #{tpu_custom_call.1} parent=0
    _
  %s14 = ssub.s32 1, %s12
  %s15 = scalar_select 0, %s14, %s12
  $region1: #{tpu_custom_call.1} parent=0
    #allocation3 [shape = 'u8[8192]{0}', space=vmem, size = 0x2000, scoped, tag = 'input window, operand 0, single buffered']
    #allocation4 [shape = 's32[1]{0}', space=sflag, size = 0x4, scoped, tag = 'scoped memory for tpu_custom_call.1']
    #allocation5 [shape = 's32[1]{0}', space=sflag, size = 0x4, scoped, tag = 'scoped memory for tpu_custom_call.1']
    #allocation6 [shape = 'u8[16384]{0}', space=vmem, size = 0x4000, scoped, tag = 'input window, operand 2, single buffered']
    #allocation7 [shape = 's32[1]{0}', space=sflag, size = 0x4, scoped, tag = 'scoped memory for tpu_custom_call.1']
    #allocation8 [shape = 'u8[1024]{0}', space=vmem, size = 0x400, scoped, tag = 'output window, operand 1, single buffered']
    #allocation9 [shape = 'u8[1024]{0}', space=vmem, size = 0x400, scoped, tag = 'output window, operand 2, single buffered']
    #allocation10 [shape = 's32[1]{0}', space=sflag, size = 0x4, scoped, tag = 'scoped memory for tpu_custom_call.1']
    %16 = vsyncpa [#allocation4], 0
    %17 = vsyncpa [#allocation7], 0
    %18 = vsyncpa [#allocation5], 0
    %19 = vsyncpa [#allocation10], 0
    // Predicated region
    $region2: #{tpu_custom_call.1} parent=1 // pred_check
      _
    $region3: #{tpu_custom_call.1} parent=1 // pred_check_branch
      %21 = sbr.rel (0) target = $region5
    $region4: #{tpu_custom_call.1} parent=1 // pred_region
      %s23 = ssub.s32 256, 256
      %24 = vsyncadd [#allocation4], %s23
      %s25 = sshll.u32 [#allocation3], 4
      %s26 = int_to_ptr.vmem [resolvable:$true] %s25
      %31 = dma.hbm_to_vmem [thread:$0]  %s0, 256, %s26, [#allocation4], 128, 128, 8
    $region5: #{tpu_custom_call.1} parent=1 // pred_fallthru
      _
    // Predicated region
    $region6: #{tpu_custom_call.1} parent=1 // pred_check
      _
    $region7: #{tpu_custom_call.1} parent=1 // pred_check_branch
      %33 = sbr.rel (0) target = $region9
    $region8: #{tpu_custom_call.1} parent=1 // pred_region
      _
    $region9: #{tpu_custom_call.1} parent=1 // pred_fallthru
      _
    // Predicated region
    $region10: #{tpu_custom_call.1} parent=1 // pred_check
      _
    $region11: #{tpu_custom_call.1} parent=1 // pred_check_branch
      %35 = sbr.rel (0) target = $region13
    $region12: #{tpu_custom_call.1} parent=1 // pred_region
      %s37 = ssub.s32 512, 512
      %38 = vsyncadd [#allocation7], %s37
      %s39 = sshll.u32 [#allocation6], 4
      %s40 = int_to_ptr.vmem [resolvable:$true] %s39
      %45 = dma.hbm_to_vmem [thread:$0]  %s2, 512, %s40, [#allocation7], 128, 128, 8
    $region13: #{tpu_custom_call.1} parent=1 // pred_fallthru
      _
    // Predicated region
    $region14: #{tpu_custom_call.1} parent=1 // pred_check
      _
    $region15: #{tpu_custom_call.1} parent=1 // pred_check_branch
      %47 = sbr.rel (0) target = $region17
    $region16: #{tpu_custom_call.1} parent=1 // pred_region
      _
    $region17: #{tpu_custom_call.1} parent=1 // pred_fallthru
      _
    // Predicated region
    $region18: #{tpu_custom_call.1} parent=1 // pred_check
      _
    $region19: #{tpu_custom_call.1} parent=1 // pred_check_branch
      %49 = sbr.rel (0) target = $region21
    $region20: #{tpu_custom_call.1} parent=1 // pred_region
      _
    $region21: #{tpu_custom_call.1} parent=1 // pred_fallthru
      _
    // Predicated region
    $region22: #{tpu_custom_call.1} parent=1 // pred_check
      _
    $region23: #{tpu_custom_call.1} parent=1 // pred_check_branch
      %51 = sbr.rel (0) target = $region25
    $region24: #{tpu_custom_call.1} parent=1 // pred_region
      _
    $region25: #{tpu_custom_call.1} parent=1 // pred_fallthru
      _
    // Predicated region
    $region26: #{tpu_custom_call.1} parent=1 // pred_check
      _
    $region27: #{tpu_custom_call.1} parent=1 // pred_check_branch
      %53 = sbr.rel (0) target = $region29
    $region28: #{tpu_custom_call.1} parent=1 // pred_region
      _
    $region29: #{tpu_custom_call.1} parent=1 // pred_fallthru
      _
    // Predicated region
    $region30: #{tpu_custom_call.1} parent=1 // pred_check
      _
    $region31: #{tpu_custom_call.1} parent=1 // pred_check_branch
      %55 = sbr.rel (0) target = $region33
    $region32: #{tpu_custom_call.1} parent=1 // pred_region
      _
    $region33: #{tpu_custom_call.1} parent=1 // pred_fallthru
      _
    // Predicated region
    $region34: #{tpu_custom_call.1} parent=1 // pred_check
      _
    $region35: #{tpu_custom_call.1} parent=1 // pred_check_branch
      %57 = sbr.rel (0) target = $region37
    $region36: #{tpu_custom_call.1} parent=1 // pred_region
      %58 = dma.done [#allocation4], 256
    $region37: #{tpu_custom_call.1} parent=1 // pred_fallthru
      _
    // Predicated region
    $region38: #{tpu_custom_call.1} parent=1 // pred_check
      _
    $region39: #{tpu_custom_call.1} parent=1 // pred_check_branch
      %60 = sbr.rel (0) target = $region41
    $region40: #{tpu_custom_call.1} parent=1 // pred_region
      %61 = dma.done [#allocation7], 512
    $region41: #{tpu_custom_call.1} parent=1 // pred_fallthru
      _
    %v62 = vld [vmem:[#allocation3] sm:$0xff]
    %v63 = vld [vmem:[#allocation3 + $0x8] sm:$0xff]
    %v64 = vld [vmem:[%s1] sm:$0xff]
    %v65 = vld [vmem:[%s1 + $0x8] sm:$0xff]
    %v66 = vld [vmem:[%s1 + $0x10] sm:$0xff]
    %v67 = vld [vmem:[%s1 + $0x18] sm:$0xff]
    %v68 = vld [vmem:[%s3] sm:$0x1]
    %v70 = vlaneseq
    %v71 = vshrl.u32 %v70, 7
    %v72 = vsub.s32 0, %v71
    %v73 = vrot.slane %v68, %v72
    %vm75 = vcmask 261120
    %v77 = vsel %vm75, %v62, 0
    %v80 = vsel %vm75, %v63, 0
    %82 = vmatprep.subr.mxu0 0.0
    %83 = vmatpush1.msra.mxu0 %v64
    %84 = vmatprep.subr.mxu0 0.0
    %85 = vmatpush1.msra.mxu0 %v65
    %86 = vmatprep.subr.mxu0 0.0
    %87 = vmatpush1.msra.mxu0 %v66
    %88 = vmatprep.subr.mxu0 0.0
    %89 = vmatpush1.msra.mxu0 %v67
    %90 = vmatprep.subr.mxu0 0.0
    %91 = vmatpush1.msra.mxu0 0.0
    %92 = vmatprep.subr.mxu0 0.0
    %93 = vmatpush1.msra.mxu0 0.0
    %94 = vmatprep.subr.mxu0 0.0
    %95 = vmatpush1.msra.mxu0 0.0
    %96 = vmatprep.subr.mxu0 0.0
    %97 = vmatpush1.msra.mxu0 0.0
    %98 = vmatprep.subr.mxu0 0.0
    %99 = vmatpush1.msra.mxu0 0.0
    %100 = vmatprep.subr.mxu0 0.0
    %101 = vmatpush1.msra.mxu0 0.0
    %102 = vmatprep.subr.mxu0 0.0
    %103 = vmatpush1.msra.mxu0 0.0
    %104 = vmatprep.subr.mxu0 0.0
    %105 = vmatpush1.msra.mxu0 0.0
    %106 = vmatprep.subr.mxu0 0.0
    %107 = vmatpush1.msra.mxu0 0.0
    %108 = vmatprep.subr.mxu0 0.0
    %109 = vmatpush1.msra.mxu0 0.0
    %110 = vmatprep.subr.mxu0 0.0
    %111 = vmatpush1.msra.mxu0 0.0
    %112 = vmatprep.subr.mxu0 0.0
    %113 = vmatpush1.msra.mxu0 0.0
    %114 = vmatprep.subr.mxu0 0.0
    %115 = vmatpush1.msra.mxu0 0.0
    %116 = vmatprep.subr.mxu0 0.0
    %117 = vmatpush1.msra.mxu0 0.0
    %118 = vmatprep.subr.mxu0 0.0
    %119 = vmatpush1.msra.mxu0 0.0
    %120 = vmatprep.subr.mxu0 0.0
    %121 = vmatpush1.msra.mxu0 0.0
    %122 = vmatprep.subr.mxu0 0.0
    %123 = vmatpush1.msra.mxu0 0.0
    %124 = vmatprep.subr.mxu0 0.0
    %125 = vmatpush1.msra.mxu0 0.0
    %126 = vmatprep.subr.mxu0 0.0
    %127 = vmatpush1.msra.mxu0 0.0
    %128 = vmatprep.subr.mxu0 0.0
    %129 = vmatpush1.msra.mxu0 0.0
    %130 = vmatprep.subr.mxu0 0.0
    %131 = vmatpush1.msra.mxu0 0.0
    %132 = vmatprep.subr.mxu0 0.0
    %133 = vmatpush1.msra.mxu0 0.0
    %134 = vmatprep.subr.mxu0 0.0
    %135 = vmatpush1.msra.mxu0 0.0
    %136 = vmatprep.subr.mxu0 0.0
    %137 = vmatpush1.msra.mxu0 0.0
    %138 = vmatprep.subr.mxu0 0.0
    %139 = vmatpush1.msra.mxu0 0.0
    %140 = vmatprep.subr.mxu0 0.0
    %141 = vmatpush1.msra.mxu0 0.0
    %142 = vmatprep.subr.mxu0 0.0
    %143 = vmatpush1.msra.mxu0 0.0
    %144 = vmatprep.subr.mxu0 0.0
    %145 = vmatpush1.msra.mxu0 0.0
    %146 = vmatprep.mubr.f32.mxu0 0.0
    %147 = vmatmul.mubr.f32.gmra.mrb[0].mxu0 %v77
    %v148 = vpop.f32.mrb[0].mxu0
    %v149 = vadd.f32 %v73, %v148
    %v150 = vpop.f32.mrb[0].mxu0
    %151 = vmatprep.mubr.f32.mxu0 0.0
    %152 = vmatmul.mubr.f32.gmra.mrb[0].mxu0 %v80
    %v153 = vpop.f32.mrb[0].mxu0
    %v154 = vadd.f32 %v73, %v153
    %v155 = vpop.f32.mrb[0].mxu0
    %156 = vdwg.mxu0
    %v157 = vld [vmem:[#allocation6] sm:$0xff]
    %v158 = vld [vmem:[#allocation6 + $0x8] sm:$0xff]
    %v159 = vld [vmem:[#allocation6 + $0x10] sm:$0xff]
    %v160 = vld [vmem:[#allocation6 + $0x18] sm:$0xff]
    %v161 = vld [vmem:[%s4] sm:$0x3]
    %v162 = vld [vmem:[%s5] sm:$0x3]
    %v164 = vsel %vm75, %v161, 0
    %166 = vmatprep.subr.mxu0 0.0
    %167 = vmatpush1.msra.mxu0 %v157
    %168 = vmatprep.subr.mxu0 0.0
    %169 = vmatpush1.msra.mxu0 %v158
    %170 = vmatprep.subr.mxu0 0.0
    %171 = vmatpush1.msra.mxu0 %v159
    %172 = vmatprep.subr.mxu0 0.0
    %173 = vmatpush1.msra.mxu0 %v160
    %174 = vmatprep.subr.mxu0 0.0
    %175 = vmatpush1.msra.mxu0 0.0
    %176 = vmatprep.subr.mxu0 0.0
    %177 = vmatpush1.msra.mxu0 0.0
    %178 = vmatprep.subr.mxu0 0.0
    %179 = vmatpush1.msra.mxu0 0.0
    %180 = vmatprep.subr.mxu0 0.0
    %181 = vmatpush1.msra.mxu0 0.0
    %182 = vmatprep.subr.mxu0 0.0
    %183 = vmatpush1.msra.mxu0 0.0
    %184 = vmatprep.subr.mxu0 0.0
    %185 = vmatpush1.msra.mxu0 0.0
    %186 = vmatprep.subr.mxu0 0.0
    %187 = vmatpush1.msra.mxu0 0.0
    %188 = vmatprep.subr.mxu0 0.0
    %189 = vmatpush1.msra.mxu0 0.0
    %190 = vmatprep.subr.mxu0 0.0
    %191 = vmatpush1.msra.mxu0 0.0
    %192 = vmatprep.subr.mxu0 0.0
    %193 = vmatpush1.msra.mxu0 0.0
    %194 = vmatprep.subr.mxu0 0.0
    %195 = vmatpush1.msra.mxu0 0.0
    %196 = vmatprep.subr.mxu0 0.0
    %197 = vmatpush1.msra.mxu0 0.0
    %198 = vmatprep.subr.mxu0 0.0
    %199 = vmatpush1.msra.mxu0 0.0
    %200 = vmatprep.subr.mxu0 0.0
    %201 = vmatpush1.msra.mxu0 0.0
    %202 = vmatprep.subr.mxu0 0.0
    %203 = vmatpush1.msra.mxu0 0.0
    %204 = vmatprep.subr.mxu0 0.0
    %205 = vmatpush1.msra.mxu0 0.0
    %206 = vmatprep.subr.mxu0 0.0
    %207 = vmatpush1.msra.mxu0 0.0
    %208 = vmatprep.subr.mxu0 0.0
    %209 = vmatpush1.msra.mxu0 0.0
    %210 = vmatprep.subr.mxu0 0.0
    %211 = vmatpush1.msra.mxu0 0.0
    %212 = vmatprep.subr.mxu0 0.0
    %213 = vmatpush1.msra.mxu0 0.0
    %214 = vmatprep.subr.mxu0 0.0
    %215 = vmatpush1.msra.mxu0 0.0
    %216 = vmatprep.subr.mxu0 0.0
    %217 = vmatpush1.msra.mxu0 0.0
    %218 = vmatprep.subr.mxu0 0.0
    %219 = vmatpush1.msra.mxu0 0.0
    %220 = vmatprep.subr.mxu0 0.0
    %221 = vmatpush1.msra.mxu0 0.0
    %222 = vmatprep.subr.mxu0 0.0
    %223 = vmatpush1.msra.mxu0 0.0
    %224 = vmatprep.subr.mxu0 0.0
    %225 = vmatpush1.msra.mxu0 0.0
    %226 = vmatprep.subr.mxu0 0.0
    %227 = vmatpush1.msra.mxu0 0.0
    %228 = vmatprep.subr.mxu0 0.0
    %229 = vmatpush1.msra.mxu0 0.0
    %230 = vmatprep.mubr.f32.mxu0 0.0
    %231 = vmatmul.mubr.f32.gmra.mrb[0].mxu0 %v164
    %v232 = vpop.f32.mrb[0].mxu0
    %v233 = vadd.f32 0.0, %v232
    %v234 = vpop.f32.mrb[0].mxu0
    %235 = vdwg.mxu0
    %v236 = vadd.f32 %v149, %v233
    %v237 = vmul.f32 %v236, 0.5
    %v238 = vtanh.pop %v237
    %v239 = vmul.f32 %v238, 0.5
    %v240 = vadd.f32 %v239, 0.5
    %v241 = vtanh.pop %v236
    %243 = vrot.lane.b32.xlu0 %v162, 32
    %v244 = vpop.permute.xlu0 %243
    %v246 = vmul.f32 %v240, %v244
    %248 = vrot.lane.b32.xlu0 %v241, 64
    %v249 = vpop.permute.xlu0 %248
    %v251 = vmul.f32 %v240, %v249
    %253 = vrot.lane.b32.xlu0 %v251, 32
    %v254 = vpop.permute.xlu0 %253
    %v256 = vadd.f32 %v246, %v254
    %v257 = vtanh.pop %v256
    %259 = vrot.lane.b32.xlu0 %v257, 64
    %v260 = vpop.permute.xlu0 %259
    %v262 = vmul.f32 %v240, %v260
    %264 = vrot.lane.b32.xlu0 %v262, 32
    %v265 = vpop.permute.xlu0 %264
    %vm267 = vcmask 254976
    %268 = vst.msk [vmem:[#allocation2] sm:$0x3] %vm267, %v265
    %v269 = vsel %vm75, %v265, 0
    %271 = vmatprep.subr.mxu0 0.0
    %272 = vmatpush1.msra.mxu0 %v157
    %273 = vmatprep.subr.mxu0 0.0
    %274 = vmatpush1.msra.mxu0 %v158
    %275 = vmatprep.subr.mxu0 0.0
    %276 = vmatpush1.msra.mxu0 %v159
    %277 = vmatprep.subr.mxu0 0.0
    %278 = vmatpush1.msra.mxu0 %v160
    %279 = vmatprep.subr.mxu0 0.0
    %280 = vmatpush1.msra.mxu0 0.0
    %281 = vmatprep.subr.mxu0 0.0
    %282 = vmatpush1.msra.mxu0 0.0
    %283 = vmatprep.subr.mxu0 0.0
    %284 = vmatpush1.msra.mxu0 0.0
    %285 = vmatprep.subr.mxu0 0.0
    %286 = vmatpush1.msra.mxu0 0.0
    %287 = vmatprep.subr.mxu0 0.0
    %288 = vmatpush1.msra.mxu0 0.0
    %289 = vmatprep.subr.mxu0 0.0
    %290 = vmatpush1.msra.mxu0 0.0
    %291 = vmatprep.subr.mxu0 0.0
    %292 = vmatpush1.msra.mxu0 0.0
    %293 = vmatprep.subr.mxu0 0.0
    %294 = vmatpush1.msra.mxu0 0.0
    %295 = vmatprep.subr.mxu0 0.0
    %296 = vmatpush1.msra.mxu0 0.0
    %297 = vmatprep.subr.mxu0 0.0
    %298 = vmatpush1.msra.mxu0 0.0
    %299 = vmatprep.subr.mxu0 0.0
    %300 = vmatpush1.msra.mxu0 0.0
    %301 = vmatprep.subr.mxu0 0.0
    %302 = vmatpush1.msra.mxu0 0.0
    %303 = vmatprep.subr.mxu0 0.0
    %304 = vmatpush1.msra.mxu0 0.0
    %305 = vmatprep.subr.mxu0 0.0
    %306 = vmatpush1.msra.mxu0 0.0
    %307 = vmatprep.subr.mxu0 0.0
    %308 = vmatpush1.msra.mxu0 0.0
    %309 = vmatprep.subr.mxu0 0.0
    %310 = vmatpush1.msra.mxu0 0.0
    %311 = vmatprep.subr.mxu0 0.0
    %312 = vmatpush1.msra.mxu0 0.0
    %313 = vmatprep.subr.mxu0 0.0
    %314 = vmatpush1.msra.mxu0 0.0
    %315 = vmatprep.subr.mxu0 0.0
    %316 = vmatpush1.msra.mxu0 0.0
    %317 = vmatprep.subr.mxu0 0.0
    %318 = vmatpush1.msra.mxu0 0.0
    %319 = vmatprep.subr.mxu0 0.0
    %320 = vmatpush1.msra.mxu0 0.0
    %321 = vmatprep.subr.mxu0 0.0
    %322 = vmatpush1.msra.mxu0 0.0
    %323 = vmatprep.subr.mxu0 0.0
    %324 = vmatpush1.msra.mxu0 0.0
    %325 = vmatprep.subr.mxu0 0.0
    %326 = vmatpush1.msra.mxu0 0.0
    %327 = vmatprep.subr.mxu0 0.0
    %328 = vmatpush1.msra.mxu0 0.0
    %329 = vmatprep.subr.mxu0 0.0
    %330 = vmatpush1.msra.mxu0 0.0
    %331 = vmatprep.subr.mxu0 0.0
    %332 = vmatpush1.msra.mxu0 0.0
    %333 = vmatprep.subr.mxu0 0.0
    %334 = vmatpush1.msra.mxu0 0.0
    %335 = vmatprep.mubr.f32.mxu0 0.0
    %336 = vmatmul.mubr.f32.gmra.mrb[0].mxu0 %v269
    %v337 = vpop.f32.mrb[0].mxu0
    %v338 = vadd.f32 0.0, %v337
    %v339 = vpop.f32.mrb[0].mxu0
    %340 = vdwg.mxu0
    %v342 = vrot.slane %v338, 6
    %v344 = vadd.f32 %v149, %v342
    %v345 = vmul.f32 %v344, 0.5
    %v346 = vtanh.pop %v345
    %v347 = vmul.f32 %v346, 0.5
    %v348 = vadd.f32 %v347, 0.5
    %v349 = vtanh.pop %v344
    %v351 = vrot.slane %v256, 6
    %v353 = vmul.f32 %v348, %v351
    %355 = vrot.lane.b32.xlu0 %v349, 64
    %v356 = vpop.permute.xlu0 %355
    %v358 = vmul.f32 %v348, %v356
    %360 = vrot.lane.b32.xlu0 %v358, 32
    %v361 = vpop.permute.xlu0 %360
    %v363 = vadd.f32 %v353, %v361
    %v364 = vtanh.pop %v363
    %366 = vrot.lane.b32.xlu0 %v364, 64
    %v367 = vpop.permute.xlu0 %366
    %v369 = vmul.f32 %v348, %v367
    %371 = vrot.lane.b32.xlu0 %v369, 32
    %v372 = vpop.permute.xlu0 %371
    %vm374 = vcmask 257026
    %375 = vst.msk [vmem:[#allocation2] sm:$0xc] %vm374, %v372
    %v376 = vrot.slane %v369, 2
    %377 = vrot.lane.b32.xlu0 %v376, 32
    %v378 = vpop.permute.xlu0 %377
    %v379 = vsel %vm75, %v378, 0
    %381 = vmatprep.subr.mxu0 0.0
    %382 = vmatpush1.msra.mxu0 %v157
    %383 = vmatprep.subr.mxu0 0.0
    %384 = vmatpush1.msra.mxu0 %v158
    %385 = vmatprep.subr.mxu0 0.0
    %386 = vmatpush1.msra.mxu0 %v159
    %387 = vmatprep.subr.mxu0 0.0
    %388 = vmatpush1.msra.mxu0 %v160
    %389 = vmatprep.subr.mxu0 0.0
    %390 = vmatpush1.msra.mxu0 0.0
    %391 = vmatprep.subr.mxu0 0.0
    %392 = vmatpush1.msra.mxu0 0.0
    %393 = vmatprep.subr.mxu0 0.0
    %394 = vmatpush1.msra.mxu0 0.0
    %395 = vmatprep.subr.mxu0 0.0
    %396 = vmatpush1.msra.mxu0 0.0
    %397 = vmatprep.subr.mxu0 0.0
    %398 = vmatpush1.msra.mxu0 0.0
    %399 = vmatprep.subr.mxu0 0.0
    %400 = vmatpush1.msra.mxu0 0.0
    %401 = vmatprep.subr.mxu0 0.0
    %402 = vmatpush1.msra.mxu0 0.0
    %403 = vmatprep.subr.mxu0 0.0
    %404 = vmatpush1.msra.mxu0 0.0
    %405 = vmatprep.subr.mxu0 0.0
    %406 = vmatpush1.msra.mxu0 0.0
    %407 = vmatprep.subr.mxu0 0.0
    %408 = vmatpush1.msra.mxu0 0.0
    %409 = vmatprep.subr.mxu0 0.0
    %410 = vmatpush1.msra.mxu0 0.0
    %411 = vmatprep.subr.mxu0 0.0
    %412 = vmatpush1.msra.mxu0 0.0
    %413 = vmatprep.subr.mxu0 0.0
    %414 = vmatpush1.msra.mxu0 0.0
    %415 = vmatprep.subr.mxu0 0.0
    %416 = vmatpush1.msra.mxu0 0.0
    %417 = vmatprep.subr.mxu0 0.0
    %418 = vmatpush1.msra.mxu0 0.0
    %419 = vmatprep.subr.mxu0 0.0
    %420 = vmatpush1.msra.mxu0 0.0
    %421 = vmatprep.subr.mxu0 0.0
    %422 = vmatpush1.msra.mxu0 0.0
    %423 = vmatprep.subr.mxu0 0.0
    %424 = vmatpush1.msra.mxu0 0.0
    %425 = vmatprep.subr.mxu0 0.0
    %426 = vmatpush1.msra.mxu0 0.0
    %427 = vmatprep.subr.mxu0 0.0
    %428 = vmatpush1.msra.mxu0 0.0
    %429 = vmatprep.subr.mxu0 0.0
    %430 = vmatpush1.msra.mxu0 0.0
    %431 = vmatprep.subr.mxu0 0.0
    %432 = vmatpush1.msra.mxu0 0.0
    %433 = vmatprep.subr.mxu0 0.0
    %434 = vmatpush1.msra.mxu0 0.0
    %435 = vmatprep.subr.mxu0 0.0
    %436 = vmatpush1.msra.mxu0 0.0
    %437 = vmatprep.subr.mxu0 0.0
    %438 = vmatpush1.msra.mxu0 0.0
    %439 = vmatprep.subr.mxu0 0.0
    %440 = vmatpush1.msra.mxu0 0.0
    %441 = vmatprep.subr.mxu0 0.0
    %442 = vmatpush1.msra.mxu0 0.0
    %443 = vmatprep.subr.mxu0 0.0
    %444 = vmatpush1.msra.mxu0 0.0
    %445 = vmatprep.mubr.f32.mxu0 0.0
    %446 = vmatmul.mubr.f32.gmra.mrb[0].mxu0 %v379
    %v447 = vpop.f32.mrb[0].mxu0
    %v448 = vadd.f32 0.0, %v447
    %v449 = vpop.f32.mrb[0].mxu0
    %450 = vdwg.mxu0
    %v452 = vrot.slane %v448, 4
    %v454 = vadd.f32 %v149, %v452
    %v455 = vmul.f32 %v454, 0.5
    %v456 = vtanh.pop %v455
    %v457 = vmul.f32 %v456, 0.5
    %v458 = vadd.f32 %v457, 0.5
    %v459 = vtanh.pop %v454
    %v461 = vrot.slane %v363, 6
    %v463 = vmul.f32 %v458, %v461
    %465 = vrot.lane.b32.xlu0 %v459, 64
    %v466 = vpop.permute.xlu0 %465
    %v468 = vmul.f32 %v458, %v466
    %470 = vrot.lane.b32.xlu0 %v468, 32
    %v471 = vpop.permute.xlu0 %470
    %v473 = vadd.f32 %v463, %v471
    %v474 = vtanh.pop %v473
    %476 = vrot.lane.b32.xlu0 %v474, 64
    %v477 = vpop.permute.xlu0 %476
    %v479 = vmul.f32 %v458, %v477
    %481 = vrot.lane.b32.xlu0 %v479, 32
    %v482 = vpop.permute.xlu0 %481
    %vm484 = vcmask 259076
    %485 = vst.msk [vmem:[#allocation2] sm:$0x30] %vm484, %v482
    %v486 = vrot.slane %v479, 4
    %487 = vrot.lane.b32.xlu0 %v486, 32
    %v488 = vpop.permute.xlu0 %487
    %v489 = vsel %vm75, %v488, 0
    %491 = vmatprep.subr.mxu0 0.0
    %492 = vmatpush1.msra.mxu0 %v157
    %493 = vmatprep.subr.mxu0 0.0
    %494 = vmatpush1.msra.mxu0 %v158
    %495 = vmatprep.subr.mxu0 0.0
    %496 = vmatpush1.msra.mxu0 %v159
    %497 = vmatprep.subr.mxu0 0.0
    %498 = vmatpush1.msra.mxu0 %v160
    %499 = vmatprep.subr.mxu0 0.0
    %500 = vmatpush1.msra.mxu0 0.0
    %501 = vmatprep.subr.mxu0 0.0
    %502 = vmatpush1.msra.mxu0 0.0
    %503 = vmatprep.subr.mxu0 0.0
    %504 = vmatpush1.msra.mxu0 0.0
    %505 = vmatprep.subr.mxu0 0.0
    %506 = vmatpush1.msra.mxu0 0.0
    %507 = vmatprep.subr.mxu0 0.0
    %508 = vmatpush1.msra.mxu0 0.0
    %509 = vmatprep.subr.mxu0 0.0
    %510 = vmatpush1.msra.mxu0 0.0
    %511 = vmatprep.subr.mxu0 0.0
    %512 = vmatpush1.msra.mxu0 0.0
    %513 = vmatprep.subr.mxu0 0.0
    %514 = vmatpush1.msra.mxu0 0.0
    %515 = vmatprep.subr.mxu0 0.0
    %516 = vmatpush1.msra.mxu0 0.0
    %517 = vmatprep.subr.mxu0 0.0
    %518 = vmatpush1.msra.mxu0 0.0
    %519 = vmatprep.subr.mxu0 0.0
    %520 = vmatpush1.msra.mxu0 0.0
    %521 = vmatprep.subr.mxu0 0.0
    %522 = vmatpush1.msra.mxu0 0.0
    %523 = vmatprep.subr.mxu0 0.0
    %524 = vmatpush1.msra.mxu0 0.0
    %525 = vmatprep.subr.mxu0 0.0
    %526 = vmatpush1.msra.mxu0 0.0
    %527 = vmatprep.subr.mxu0 0.0
    %528 = vmatpush1.msra.mxu0 0.0
    %529 = vmatprep.subr.mxu0 0.0
    %530 = vmatpush1.msra.mxu0 0.0
    %531 = vmatprep.subr.mxu0 0.0
    %532 = vmatpush1.msra.mxu0 0.0
    %533 = vmatprep.subr.mxu0 0.0
    %534 = vmatpush1.msra.mxu0 0.0
    %535 = vmatprep.subr.mxu0 0.0
    %536 = vmatpush1.msra.mxu0 0.0
    %537 = vmatprep.subr.mxu0 0.0
    %538 = vmatpush1.msra.mxu0 0.0
    %539 = vmatprep.subr.mxu0 0.0
    %540 = vmatpush1.msra.mxu0 0.0
    %541 = vmatprep.subr.mxu0 0.0
    %542 = vmatpush1.msra.mxu0 0.0
    %543 = vmatprep.subr.mxu0 0.0
    %544 = vmatpush1.msra.mxu0 0.0
    %545 = vmatprep.subr.mxu0 0.0
    %546 = vmatpush1.msra.mxu0 0.0
    %547 = vmatprep.subr.mxu0 0.0
    %548 = vmatpush1.msra.mxu0 0.0
    %549 = vmatprep.subr.mxu0 0.0
    %550 = vmatpush1.msra.mxu0 0.0
    %551 = vmatprep.subr.mxu0 0.0
    %552 = vmatpush1.msra.mxu0 0.0
    %553 = vmatprep.subr.mxu0 0.0
    %554 = vmatpush1.msra.mxu0 0.0
    %555 = vmatprep.mubr.f32.mxu0 0.0
    %556 = vmatmul.mubr.f32.gmra.mrb[0].mxu0 %v489
    %v557 = vpop.f32.mrb[0].mxu0
    %v558 = vadd.f32 0.0, %v557
    %v559 = vpop.f32.mrb[0].mxu0
    %560 = vdwg.mxu0
    %v562 = vrot.slane %v558, 2
    %v564 = vadd.f32 %v149, %v562
    %v565 = vmul.f32 %v564, 0.5
    %v566 = vtanh.pop %v565
    %v567 = vmul.f32 %v566, 0.5
    %v568 = vadd.f32 %v567, 0.5
    %v569 = vtanh.pop %v564
    %v571 = vrot.slane %v473, 6
    %v573 = vmul.f32 %v568, %v571
    %575 = vrot.lane.b32.xlu0 %v569, 64
    %v576 = vpop.permute.xlu0 %575
    %v578 = vmul.f32 %v568, %v576
    %580 = vrot.lane.b32.xlu0 %v578, 32
    %v581 = vpop.permute.xlu0 %580
    %v583 = vadd.f32 %v573, %v581
    %v584 = vtanh.pop %v583
    %586 = vrot.lane.b32.xlu0 %v584, 64
    %v587 = vpop.permute.xlu0 %586
    %v589 = vmul.f32 %v568, %v587
    %591 = vrot.lane.b32.xlu0 %v589, 32
    %v592 = vpop.permute.xlu0 %591
    %vm594 = vcmask 261126
    %595 = vst.msk [vmem:[#allocation2] sm:$0xc0] %vm594, %v592
    %v596 = vrot.slane %v589, 6
    %597 = vrot.lane.b32.xlu0 %v596, 32
    %v598 = vpop.permute.xlu0 %597
    %v599 = vsel %vm75, %v598, 0
    %601 = vmatprep.subr.mxu0 0.0
    %602 = vmatpush1.msra.mxu0 %v157
    %603 = vmatprep.subr.mxu0 0.0
    %604 = vmatpush1.msra.mxu0 %v158
    %605 = vmatprep.subr.mxu0 0.0
    %606 = vmatpush1.msra.mxu0 %v159
    %607 = vmatprep.subr.mxu0 0.0
    %608 = vmatpush1.msra.mxu0 %v160
    %609 = vmatprep.subr.mxu0 0.0
    %610 = vmatpush1.msra.mxu0 0.0
    %611 = vmatprep.subr.mxu0 0.0
    %612 = vmatpush1.msra.mxu0 0.0
    %613 = vmatprep.subr.mxu0 0.0
    %614 = vmatpush1.msra.mxu0 0.0
    %615 = vmatprep.subr.mxu0 0.0
    %616 = vmatpush1.msra.mxu0 0.0
    %617 = vmatprep.subr.mxu0 0.0
    %618 = vmatpush1.msra.mxu0 0.0
    %619 = vmatprep.subr.mxu0 0.0
    %620 = vmatpush1.msra.mxu0 0.0
    %621 = vmatprep.subr.mxu0 0.0
    %622 = vmatpush1.msra.mxu0 0.0
    %623 = vmatprep.subr.mxu0 0.0
    %624 = vmatpush1.msra.mxu0 0.0
    %625 = vmatprep.subr.mxu0 0.0
    %626 = vmatpush1.msra.mxu0 0.0
    %627 = vmatprep.subr.mxu0 0.0
    %628 = vmatpush1.msra.mxu0 0.0
    %629 = vmatprep.subr.mxu0 0.0
    %630 = vmatpush1.msra.mxu0 0.0
    %631 = vmatprep.subr.mxu0 0.0
    %632 = vmatpush1.msra.mxu0 0.0
    %633 = vmatprep.subr.mxu0 0.0
    %634 = vmatpush1.msra.mxu0 0.0
    %635 = vmatprep.subr.mxu0 0.0
    %636 = vmatpush1.msra.mxu0 0.0
    %637 = vmatprep.subr.mxu0 0.0
    %638 = vmatpush1.msra.mxu0 0.0
    %639 = vmatprep.subr.mxu0 0.0
    %640 = vmatpush1.msra.mxu0 0.0
    %641 = vmatprep.subr.mxu0 0.0
    %642 = vmatpush1.msra.mxu0 0.0
    %643 = vmatprep.subr.mxu0 0.0
    %644 = vmatpush1.msra.mxu0 0.0
    %645 = vmatprep.subr.mxu0 0.0
    %646 = vmatpush1.msra.mxu0 0.0
    %647 = vmatprep.subr.mxu0 0.0
    %648 = vmatpush1.msra.mxu0 0.0
    %649 = vmatprep.subr.mxu0 0.0
    %650 = vmatpush1.msra.mxu0 0.0
    %651 = vmatprep.subr.mxu0 0.0
    %652 = vmatpush1.msra.mxu0 0.0
    %653 = vmatprep.subr.mxu0 0.0
    %654 = vmatpush1.msra.mxu0 0.0
    %655 = vmatprep.subr.mxu0 0.0
    %656 = vmatpush1.msra.mxu0 0.0
    %657 = vmatprep.subr.mxu0 0.0
    %658 = vmatpush1.msra.mxu0 0.0
    %659 = vmatprep.subr.mxu0 0.0
    %660 = vmatpush1.msra.mxu0 0.0
    %661 = vmatprep.subr.mxu0 0.0
    %662 = vmatpush1.msra.mxu0 0.0
    %663 = vmatprep.subr.mxu0 0.0
    %664 = vmatpush1.msra.mxu0 0.0
    %665 = vmatprep.mubr.f32.mxu0 0.0
    %666 = vmatmul.mubr.f32.gmra.mrb[0].mxu0 %v599
    %v667 = vpop.f32.mrb[0].mxu0
    %v668 = vadd.f32 0.0, %v667
    %v669 = vpop.f32.mrb[0].mxu0
    %670 = vdwg.mxu0
    %v671 = vadd.f32 %v154, %v668
    %v672 = vmul.f32 %v671, 0.5
    %v673 = vtanh.pop %v672
    %v674 = vmul.f32 %v673, 0.5
    %v675 = vadd.f32 %v674, 0.5
    %v676 = vtanh.pop %v671
    %v678 = vrot.slane %v583, 6
    %v680 = vmul.f32 %v675, %v678
    %682 = vrot.lane.b32.xlu0 %v676, 64
    %v683 = vpop.permute.xlu0 %682
    %v685 = vmul.f32 %v675, %v683
    %687 = vrot.lane.b32.xlu0 %v685, 32
    %v688 = vpop.permute.xlu0 %687
    %v690 = vadd.f32 %v680, %v688
    %v691 = vtanh.pop %v690
    %693 = vrot.lane.b32.xlu0 %v691, 64
    %v694 = vpop.permute.xlu0 %693
    %v696 = vmul.f32 %v675, %v694
    %698 = vrot.lane.b32.xlu0 %v696, 32
    %v699 = vpop.permute.xlu0 %698
    %701 = vst.msk [vmem:[#allocation2 + $0x8] sm:$0x3] %vm267, %v699
    %v702 = vsel %vm75, %v699, 0
    %704 = vmatprep.subr.mxu0 0.0
    %705 = vmatpush1.msra.mxu0 %v157
    %706 = vmatprep.subr.mxu0 0.0
    %707 = vmatpush1.msra.mxu0 %v158
    %708 = vmatprep.subr.mxu0 0.0
    %709 = vmatpush1.msra.mxu0 %v159
    %710 = vmatprep.subr.mxu0 0.0
    %711 = vmatpush1.msra.mxu0 %v160
    %712 = vmatprep.subr.mxu0 0.0
    %713 = vmatpush1.msra.mxu0 0.0
    %714 = vmatprep.subr.mxu0 0.0
    %715 = vmatpush1.msra.mxu0 0.0
    %716 = vmatprep.subr.mxu0 0.0
    %717 = vmatpush1.msra.mxu0 0.0
    %718 = vmatprep.subr.mxu0 0.0
    %719 = vmatpush1.msra.mxu0 0.0
    %720 = vmatprep.subr.mxu0 0.0
    %721 = vmatpush1.msra.mxu0 0.0
    %722 = vmatprep.subr.mxu0 0.0
    %723 = vmatpush1.msra.mxu0 0.0
    %724 = vmatprep.subr.mxu0 0.0
    %725 = vmatpush1.msra.mxu0 0.0
    %726 = vmatprep.subr.mxu0 0.0
    %727 = vmatpush1.msra.mxu0 0.0
    %728 = vmatprep.subr.mxu0 0.0
    %729 = vmatpush1.msra.mxu0 0.0
    %730 = vmatprep.subr.mxu0 0.0
    %731 = vmatpush1.msra.mxu0 0.0
    %732 = vmatprep.subr.mxu0 0.0
    %733 = vmatpush1.msra.mxu0 0.0
    %734 = vmatprep.subr.mxu0 0.0
    %735 = vmatpush1.msra.mxu0 0.0
    %736 = vmatprep.subr.mxu0 0.0
    %737 = vmatpush1.msra.mxu0 0.0
    %738 = vmatprep.subr.mxu0 0.0
    %739 = vmatpush1.msra.mxu0 0.0
    %740 = vmatprep.subr.mxu0 0.0
    %741 = vmatpush1.msra.mxu0 0.0
    %742 = vmatprep.subr.mxu0 0.0
    %743 = vmatpush1.msra.mxu0 0.0
    %744 = vmatprep.subr.mxu0 0.0
    %745 = vmatpush1.msra.mxu0 0.0
    %746 = vmatprep.subr.mxu0 0.0
    %747 = vmatpush1.msra.mxu0 0.0
    %748 = vmatprep.subr.mxu0 0.0
    %749 = vmatpush1.msra.mxu0 0.0
    %750 = vmatprep.subr.mxu0 0.0
    %751 = vmatpush1.msra.mxu0 0.0
    %752 = vmatprep.subr.mxu0 0.0
    %753 = vmatpush1.msra.mxu0 0.0
    %754 = vmatprep.subr.mxu0 0.0
    %755 = vmatpush1.msra.mxu0 0.0
    %756 = vmatprep.subr.mxu0 0.0
    %757 = vmatpush1.msra.mxu0 0.0
    %758 = vmatprep.subr.mxu0 0.0
    %759 = vmatpush1.msra.mxu0 0.0
    %760 = vmatprep.subr.mxu0 0.0
    %761 = vmatpush1.msra.mxu0 0.0
    %762 = vmatprep.subr.mxu0 0.0
    %763 = vmatpush1.msra.mxu0 0.0
    %764 = vmatprep.subr.mxu0 0.0
    %765 = vmatpush1.msra.mxu0 0.0
    %766 = vmatprep.subr.mxu0 0.0
    %767 = vmatpush1.msra.mxu0 0.0
    %768 = vmatprep.mubr.f32.mxu0 0.0
    %769 = vmatmul.mubr.f32.gmra.mrb[0].mxu0 %v702
    %v770 = vpop.f32.mrb[0].mxu0
    %v771 = vadd.f32 0.0, %v770
    %v772 = vpop.f32.mrb[0].mxu0
    %773 = vdwg.mxu0
    %v775 = vrot.slane %v771, 6
    %v777 = vadd.f32 %v154, %v775
    %v778 = vmul.f32 %v777, 0.5
    %v779 = vtanh.pop %v778
    %v780 = vmul.f32 %v779, 0.5
    %v781 = vadd.f32 %v780, 0.5
    %v782 = vtanh.pop %v777
    %v784 = vrot.slane %v690, 6
    %v786 = vmul.f32 %v781, %v784
    %788 = vrot.lane.b32.xlu0 %v782, 64
    %v789 = vpop.permute.xlu0 %788
    %v791 = vmul.f32 %v781, %v789
    %793 = vrot.lane.b32.xlu0 %v791, 32
    %v794 = vpop.permute.xlu0 %793
    %v796 = vadd.f32 %v786, %v794
    %v797 = vtanh.pop %v796
    %799 = vrot.lane.b32.xlu0 %v797, 64
    %v800 = vpop.permute.xlu0 %799
    %v802 = vmul.f32 %v781, %v800
    %804 = vrot.lane.b32.xlu0 %v802, 32
    %v805 = vpop.permute.xlu0 %804
    %807 = vst.msk [vmem:[#allocation2 + $0x8] sm:$0xc] %vm374, %v805
    %v808 = vrot.slane %v802, 2
    %809 = vrot.lane.b32.xlu0 %v808, 32
    %v810 = vpop.permute.xlu0 %809
    %v811 = vsel %vm75, %v810, 0
    %813 = vmatprep.subr.mxu0 0.0
    %814 = vmatpush1.msra.mxu0 %v157
    %815 = vmatprep.subr.mxu0 0.0
    %816 = vmatpush1.msra.mxu0 %v158
    %817 = vmatprep.subr.mxu0 0.0
    %818 = vmatpush1.msra.mxu0 %v159
    %819 = vmatprep.subr.mxu0 0.0
    %820 = vmatpush1.msra.mxu0 %v160
    %821 = vmatprep.subr.mxu0 0.0
    %822 = vmatpush1.msra.mxu0 0.0
    %823 = vmatprep.subr.mxu0 0.0
    %824 = vmatpush1.msra.mxu0 0.0
    %825 = vmatprep.subr.mxu0 0.0
    %826 = vmatpush1.msra.mxu0 0.0
    %827 = vmatprep.subr.mxu0 0.0
    %828 = vmatpush1.msra.mxu0 0.0
    %829 = vmatprep.subr.mxu0 0.0
    %830 = vmatpush1.msra.mxu0 0.0
    %831 = vmatprep.subr.mxu0 0.0
    %832 = vmatpush1.msra.mxu0 0.0
    %833 = vmatprep.subr.mxu0 0.0
    %834 = vmatpush1.msra.mxu0 0.0
    %835 = vmatprep.subr.mxu0 0.0
    %836 = vmatpush1.msra.mxu0 0.0
    %837 = vmatprep.subr.mxu0 0.0
    %838 = vmatpush1.msra.mxu0 0.0
    %839 = vmatprep.subr.mxu0 0.0
    %840 = vmatpush1.msra.mxu0 0.0
    %841 = vmatprep.subr.mxu0 0.0
    %842 = vmatpush1.msra.mxu0 0.0
    %843 = vmatprep.subr.mxu0 0.0
    %844 = vmatpush1.msra.mxu0 0.0
    %845 = vmatprep.subr.mxu0 0.0
    %846 = vmatpush1.msra.mxu0 0.0
    %847 = vmatprep.subr.mxu0 0.0
    %848 = vmatpush1.msra.mxu0 0.0
    %849 = vmatprep.subr.mxu0 0.0
    %850 = vmatpush1.msra.mxu0 0.0
    %851 = vmatprep.subr.mxu0 0.0
    %852 = vmatpush1.msra.mxu0 0.0
    %853 = vmatprep.subr.mxu0 0.0
    %854 = vmatpush1.msra.mxu0 0.0
    %855 = vmatprep.subr.mxu0 0.0
    %856 = vmatpush1.msra.mxu0 0.0
    %857 = vmatprep.subr.mxu0 0.0
    %858 = vmatpush1.msra.mxu0 0.0
    %859 = vmatprep.subr.mxu0 0.0
    %860 = vmatpush1.msra.mxu0 0.0
    %861 = vmatprep.subr.mxu0 0.0
    %862 = vmatpush1.msra.mxu0 0.0
    %863 = vmatprep.subr.mxu0 0.0
    %864 = vmatpush1.msra.mxu0 0.0
    %865 = vmatprep.subr.mxu0 0.0
    %866 = vmatpush1.msra.mxu0 0.0
    %867 = vmatprep.subr.mxu0 0.0
    %868 = vmatpush1.msra.mxu0 0.0
    %869 = vmatprep.subr.mxu0 0.0
    %870 = vmatpush1.msra.mxu0 0.0
    %871 = vmatprep.subr.mxu0 0.0
    %872 = vmatpush1.msra.mxu0 0.0
    %873 = vmatprep.subr.mxu0 0.0
    %874 = vmatpush1.msra.mxu0 0.0
    %875 = vmatprep.subr.mxu0 0.0
    %876 = vmatpush1.msra.mxu0 0.0
    %877 = vmatprep.mubr.f32.mxu0 0.0
    %878 = vmatmul.mubr.f32.gmra.mrb[0].mxu0 %v811
    %v879 = vpop.f32.mrb[0].mxu0
    %v880 = vadd.f32 0.0, %v879
    %v881 = vpop.f32.mrb[0].mxu0
    %882 = vdwg.mxu0
    %v884 = vrot.slane %v880, 4
    %v886 = vadd.f32 %v154, %v884
    %v887 = vmul.f32 %v886, 0.5
    %v888 = vtanh.pop %v887
    %v889 = vmul.f32 %v888, 0.5
    %v890 = vadd.f32 %v889, 0.5
    %v891 = vtanh.pop %v886
    %v893 = vrot.slane %v796, 6
    %v895 = vmul.f32 %v890, %v893
    %897 = vrot.lane.b32.xlu0 %v891, 64
    %v898 = vpop.permute.xlu0 %897
    %v900 = vmul.f32 %v890, %v898
    %902 = vrot.lane.b32.xlu0 %v900, 32
    %v903 = vpop.permute.xlu0 %902
    %v905 = vadd.f32 %v895, %v903
    %v906 = vtanh.pop %v905
    %908 = vrot.lane.b32.xlu0 %v906, 64
    %v909 = vpop.permute.xlu0 %908
    %v911 = vmul.f32 %v890, %v909
    %913 = vrot.lane.b32.xlu0 %v911, 32
    %v914 = vpop.permute.xlu0 %913
    %916 = vst.msk [vmem:[#allocation2 + $0x8] sm:$0x30] %vm484, %v914
    %v917 = vrot.slane %v911, 4
    %918 = vrot.lane.b32.xlu0 %v917, 32
    %v919 = vpop.permute.xlu0 %918
    %v920 = vsel %vm75, %v919, 0
    %922 = vmatprep.subr.mxu0 0.0
    %923 = vmatpush1.msra.mxu0 %v157
    %924 = vmatprep.subr.mxu0 0.0
    %925 = vmatpush1.msra.mxu0 %v158
    %926 = vmatprep.subr.mxu0 0.0
    %927 = vmatpush1.msra.mxu0 %v159
    %928 = vmatprep.subr.mxu0 0.0
    %929 = vmatpush1.msra.mxu0 %v160
    %930 = vmatprep.subr.mxu0 0.0
    %931 = vmatpush1.msra.mxu0 0.0
    %932 = vmatprep.subr.mxu0 0.0
    %933 = vmatpush1.msra.mxu0 0.0
    %934 = vmatprep.subr.mxu0 0.0
    %935 = vmatpush1.msra.mxu0 0.0
    %936 = vmatprep.subr.mxu0 0.0
    %937 = vmatpush1.msra.mxu0 0.0
    %938 = vmatprep.subr.mxu0 0.0
    %939 = vmatpush1.msra.mxu0 0.0
    %940 = vmatprep.subr.mxu0 0.0
    %941 = vmatpush1.msra.mxu0 0.0
    %942 = vmatprep.subr.mxu0 0.0
    %943 = vmatpush1.msra.mxu0 0.0
    %944 = vmatprep.subr.mxu0 0.0
    %945 = vmatpush1.msra.mxu0 0.0
    %946 = vmatprep.subr.mxu0 0.0
    %947 = vmatpush1.msra.mxu0 0.0
    %948 = vmatprep.subr.mxu0 0.0
    %949 = vmatpush1.msra.mxu0 0.0
    %950 = vmatprep.subr.mxu0 0.0
    %951 = vmatpush1.msra.mxu0 0.0
    %952 = vmatprep.subr.mxu0 0.0
    %953 = vmatpush1.msra.mxu0 0.0
    %954 = vmatprep.subr.mxu0 0.0
    %955 = vmatpush1.msra.mxu0 0.0
    %956 = vmatprep.subr.mxu0 0.0
    %957 = vmatpush1.msra.mxu0 0.0
    %958 = vmatprep.subr.mxu0 0.0
    %959 = vmatpush1.msra.mxu0 0.0
    %960 = vmatprep.subr.mxu0 0.0
    %961 = vmatpush1.msra.mxu0 0.0
    %962 = vmatprep.subr.mxu0 0.0
    %963 = vmatpush1.msra.mxu0 0.0
    %964 = vmatprep.subr.mxu0 0.0
    %965 = vmatpush1.msra.mxu0 0.0
    %966 = vmatprep.subr.mxu0 0.0
    %967 = vmatpush1.msra.mxu0 0.0
    %968 = vmatprep.subr.mxu0 0.0
    %969 = vmatpush1.msra.mxu0 0.0
    %970 = vmatprep.subr.mxu0 0.0
    %971 = vmatpush1.msra.mxu0 0.0
    %972 = vmatprep.subr.mxu0 0.0
    %973 = vmatpush1.msra.mxu0 0.0
    %974 = vmatprep.subr.mxu0 0.0
    %975 = vmatpush1.msra.mxu0 0.0
    %976 = vmatprep.subr.mxu0 0.0
    %977 = vmatpush1.msra.mxu0 0.0
    %978 = vmatprep.subr.mxu0 0.0
    %979 = vmatpush1.msra.mxu0 0.0
    %980 = vmatprep.subr.mxu0 0.0
    %981 = vmatpush1.msra.mxu0 0.0
    %982 = vmatprep.subr.mxu0 0.0
    %983 = vmatpush1.msra.mxu0 0.0
    %984 = vmatprep.subr.mxu0 0.0
    %985 = vmatpush1.msra.mxu0 0.0
    %986 = vmatprep.mubr.f32.mxu0 0.0
    %987 = vmatmul.mubr.f32.gmra.mrb[0].mxu0 %v920
    %v988 = vpop.f32.mrb[0].mxu0
    %v989 = vadd.f32 0.0, %v988
    %v990 = vpop.f32.mrb[0].mxu0
    %991 = vdwg.mxu0
    %v993 = vrot.slane %v989, 2
    %v995 = vadd.f32 %v154, %v993
    %v996 = vmul.f32 %v995, 0.5
    %v997 = vtanh.pop %v996
    %v998 = vmul.f32 %v997, 0.5
    %v999 = vadd.f32 %v998, 0.5
    %v1000 = vtanh.pop %v995
    %v1002 = vrot.slane %v905, 6
    %v1004 = vmul.f32 %v999, %v1002
    %1006 = vrot.lane.b32.xlu0 %v1000, 64
    %v1007 = vpop.permute.xlu0 %1006
    %v1009 = vmul.f32 %v999, %v1007
    %1011 = vrot.lane.b32.xlu0 %v1009, 32
    %v1012 = vpop.permute.xlu0 %1011
    %v1014 = vadd.f32 %v1004, %v1012
    %v1015 = vtanh.pop %v1014
    %1017 = vrot.lane.b32.xlu0 %v1015, 64
    %v1018 = vpop.permute.xlu0 %1017
    %v1020 = vmul.f32 %v999, %v1018
    %1022 = vrot.lane.b32.xlu0 %v1020, 32
    %v1023 = vpop.permute.xlu0 %1022
    %1025 = vst.msk [vmem:[#allocation2 + $0x8] sm:$0xc0] %vm594, %v1023
    %v1026 = vld [vmem:[#allocation2] sm:$0xff]
    %v1027 = vld [vmem:[#allocation2 + $0x8] sm:$0xff]
    %v1028 = vld [vmem:[%s6] sm:$0xff]
    %v1029 = vld [vmem:[%s6 + $0x8] sm:$0xff]
    %v1030 = vld [vmem:[%s6 + $0x10] sm:$0xff]
    %v1031 = vld [vmem:[%s6 + $0x18] sm:$0xff]
    %v1032 = vld [vmem:[%s7] sm:$0x1]
    %v1034 = vlaneseq
    %v1035 = vshrl.u32 %v1034, 7
    %v1036 = vsub.s32 0, %v1035
    %v1037 = vrot.slane %v1032, %v1036
    %v1040 = vsel %vm75, %v1026, 0
    %v1043 = vsel %vm75, %v1027, 0
    %1045 = vmatprep.subr.mxu0 0.0
    %1046 = vmatpush1.msra.mxu0 %v1028
    %1047 = vmatprep.subr.mxu0 0.0
    %1048 = vmatpush1.msra.mxu0 %v1029
    %1049 = vmatprep.subr.mxu0 0.0
    %1050 = vmatpush1.msra.mxu0 %v1030
    %1051 = vmatprep.subr.mxu0 0.0
    %1052 = vmatpush1.msra.mxu0 %v1031
    %1053 = vmatprep.subr.mxu0 0.0
    %1054 = vmatpush1.msra.mxu0 0.0
    %1055 = vmatprep.subr.mxu0 0.0
    %1056 = vmatpush1.msra.mxu0 0.0
    %1057 = vmatprep.subr.mxu0 0.0
    %1058 = vmatpush1.msra.mxu0 0.0
    %1059 = vmatprep.subr.mxu0 0.0
    %1060 = vmatpush1.msra.mxu0 0.0
    %1061 = vmatprep.subr.mxu0 0.0
    %1062 = vmatpush1.msra.mxu0 0.0
    %1063 = vmatprep.subr.mxu0 0.0
    %1064 = vmatpush1.msra.mxu0 0.0
    %1065 = vmatprep.subr.mxu0 0.0
    %1066 = vmatpush1.msra.mxu0 0.0
    %1067 = vmatprep.subr.mxu0 0.0
    %1068 = vmatpush1.msra.mxu0 0.0
    %1069 = vmatprep.subr.mxu0 0.0
    %1070 = vmatpush1.msra.mxu0 0.0
    %1071 = vmatprep.subr.mxu0 0.0
    %1072 = vmatpush1.msra.mxu0 0.0
    %1073 = vmatprep.subr.mxu0 0.0
    %1074 = vmatpush1.msra.mxu0 0.0
    %1075 = vmatprep.subr.mxu0 0.0
    %1076 = vmatpush1.msra.mxu0 0.0
    %1077 = vmatprep.subr.mxu0 0.0
    %1078 = vmatpush1.msra.mxu0 0.0
    %1079 = vmatprep.subr.mxu0 0.0
    %1080 = vmatpush1.msra.mxu0 0.0
    %1081 = vmatprep.subr.mxu0 0.0
    %1082 = vmatpush1.msra.mxu0 0.0
    %1083 = vmatprep.subr.mxu0 0.0
    %1084 = vmatpush1.msra.mxu0 0.0
    %1085 = vmatprep.subr.mxu0 0.0
    %1086 = vmatpush1.msra.mxu0 0.0
    %1087 = vmatprep.subr.mxu0 0.0
    %1088 = vmatpush1.msra.mxu0 0.0
    %1089 = vmatprep.subr.mxu0 0.0
    %1090 = vmatpush1.msra.mxu0 0.0
    %1091 = vmatprep.subr.mxu0 0.0
    %1092 = vmatpush1.msra.mxu0 0.0
    %1093 = vmatprep.subr.mxu0 0.0
    %1094 = vmatpush1.msra.mxu0 0.0
    %1095 = vmatprep.subr.mxu0 0.0
    %1096 = vmatpush1.msra.mxu0 0.0
    %1097 = vmatprep.subr.mxu0 0.0
    %1098 = vmatpush1.msra.mxu0 0.0
    %1099 = vmatprep.subr.mxu0 0.0
    %1100 = vmatpush1.msra.mxu0 0.0
    %1101 = vmatprep.subr.mxu0 0.0
    %1102 = vmatpush1.msra.mxu0 0.0
    %1103 = vmatprep.subr.mxu0 0.0
    %1104 = vmatpush1.msra.mxu0 0.0
    %1105 = vmatprep.subr.mxu0 0.0
    %1106 = vmatpush1.msra.mxu0 0.0
    %1107 = vmatprep.subr.mxu0 0.0
    %1108 = vmatpush1.msra.mxu0 0.0
    %1109 = vmatprep.mubr.f32.mxu0 0.0
    %1110 = vmatmul.mubr.f32.gmra.mrb[0].mxu0 %v1040
    %v1111 = vpop.f32.mrb[0].mxu0
    %v1112 = vadd.f32 %v1037, %v1111
    %v1113 = vpop.f32.mrb[0].mxu0
    %1114 = vmatprep.mubr.f32.mxu0 0.0
    %1115 = vmatmul.mubr.f32.gmra.mrb[0].mxu0 %v1043
    %v1116 = vpop.f32.mrb[0].mxu0
    %v1117 = vadd.f32 %v1037, %v1116
    %v1118 = vpop.f32.mrb[0].mxu0
    %1119 = vdwg.mxu0
    %vm1120 = vcmask 64512
    %1121 = vst.msk [vmem:[%s8] sm:$0xff] %vm1120, %v1112
    %1122 = vst.msk [vmem:[%s8 + $0x8] sm:$0xff] %vm1120, %v1117
    %1123 = vst.msk [vmem:[#allocation8 - $0x6] sm:$0xc0] %vm594, %v1023
    %1125 = vrot.lane.b32.xlu0 %v1014, 96
    %v1126 = vpop.permute.xlu0 %1125
    %1128 = vst.msk [vmem:[#allocation9 - $0x6] sm:$0xc0] %vm594, %v1126
    // Predicated region
    $region42: #{tpu_custom_call.1} parent=1 // pred_check
      _
    $region43: #{tpu_custom_call.1} parent=1 // pred_check_branch
      %1130 = sbr.rel (0) target = $region45
    $region44: #{tpu_custom_call.1} parent=1 // pred_region
      _
    $region45: #{tpu_custom_call.1} parent=1 // pred_fallthru
      _
    // Predicated region
    $region46: #{tpu_custom_call.1} parent=1 // pred_check
      _
    $region47: #{tpu_custom_call.1} parent=1 // pred_check_branch
      %1132 = sbr.rel (0) target = $region49
    $region48: #{tpu_custom_call.1} parent=1 // pred_region
      %s1134 = ssub.s32 32, 32
      %1135 = vsyncadd [#allocation5], %s1134
      %s1137 = sshll.u32 [#allocation8], 4
      %s1138 = int_to_ptr.vmem [resolvable:$true] %s1137
      %1140 = dma.vmem_to_hbm [thread:$0]  %s1138, 32, %s9, [#allocation5]
    $region49: #{tpu_custom_call.1} parent=1 // pred_fallthru
      _
    // Predicated region
    $region50: #{tpu_custom_call.1} parent=1 // pred_check
      _
    $region51: #{tpu_custom_call.1} parent=1 // pred_check_branch
      %1142 = sbr.rel (0) target = $region53
    $region52: #{tpu_custom_call.1} parent=1 // pred_region
      %s1144 = ssub.s32 32, 32
      %1145 = vsyncadd [#allocation10], %s1144
      %s1147 = sshll.u32 [#allocation9], 4
      %s1148 = int_to_ptr.vmem [resolvable:$true] %s1147
      %1150 = dma.vmem_to_hbm [thread:$0]  %s1148, 32, %s10, [#allocation10]
    $region53: #{tpu_custom_call.1} parent=1 // pred_fallthru
      _
    // Predicated region
    $region54: #{tpu_custom_call.1} parent=1 // pred_check
      _
    $region55: #{tpu_custom_call.1} parent=1 // pred_check_branch
      %1152 = sbr.rel (0) target = $region57
    $region56: #{tpu_custom_call.1} parent=1 // pred_region
      _
    $region57: #{tpu_custom_call.1} parent=1 // pred_fallthru
      _
    // Predicated region
    $region58: #{tpu_custom_call.1} parent=1 // pred_check
      _
    $region59: #{tpu_custom_call.1} parent=1 // pred_check_branch
      %1154 = sbr.rel (0) target = $region61
    $region60: #{tpu_custom_call.1} parent=1 // pred_region
      %1155 = dma.done [#allocation5], 32
    $region61: #{tpu_custom_call.1} parent=1 // pred_fallthru
      _
    // Predicated region
    $region62: #{tpu_custom_call.1} parent=1 // pred_check
      _
    $region63: #{tpu_custom_call.1} parent=1 // pred_check_branch
      %1157 = sbr.rel (0) target = $region65
    $region64: #{tpu_custom_call.1} parent=1 // pred_region
      %1158 = dma.done [#allocation10], 32
    $region65: #{tpu_custom_call.1} parent=1 // pred_fallthru
      _
    %1159 = vsyncpa [#allocation4], 1
    %1160 = vsyncpa [#allocation7], 1
    %1161 = vsyncpa [#allocation5], 1
    %1162 = vsyncpa [#allocation10], 1

</llo_original>
